<compile_context>
chip_gen: v5e
topology: v5e:2x2
jax: 0.10.0
libtpu: 0.0.40
codegen_flags: <defaults>
</compile_context>

<pallas_src>
import functools

import numpy as np

import jax
import jax.numpy as jnp
from jax.experimental import pallas as pl
from jax.experimental.pallas import tpu as pltpu


def _round_up(n, m):
    return ((n + m - 1) // m) * m


def _cdiv(a, b):
    return (a + b - 1) // b


def _cnn_pool_cls_kernel(x_ref, wconv_ref, w12_ref, wl3_ref, bpack_ref,
                         bl3_ref, pc_ref, out_ref, *, pooling_ops, s_out):
    """One batch tile: fused 3-conv -> pooling -> 3-layer MLP classifier.

    x_ref    : (S+2, TB, P)  seq-major batch tile (compute dtype)
    wconv_ref: (4*P, P)      channel-packed conv weight (compute dtype)
    w12_ref  : (2, P, P)     wl1 | wl2 stacked, stored (in, out) (compute dtype)
    wl3_ref  : (P, Ep)       final linear weight (compute dtype)
    bpack_ref: (3, P)        conv bias | bl1 | bl2 (f32)
    bl3_ref  : (1, Ep)       final bias (f32)
    pc_ref   : (2*s_out, P)  rows [0:s_out]  additive validity mask (0 / -1e30)
                             rows [s_out:]   valid/count weights for the mean
    out_ref  : (TB, Ep)      f32 logits tile
    """
    cdt = x_ref.dtype                    # bf16 fast path, f32 validation path
    max_mean = pooling_ops == "max_mean"

    w_conv = wconv_ref[...]              # (4P, P), resident across positions
    m_acc = None                         # running max  (f32)
    s_acc = None                         # running mean (f32, max_mean only)
    for p in range(s_out):               # static: s_out = S - 1 window positions
        # im2col row block for position p: 4 seq rows concatenated along lanes.
        window = jnp.concatenate(
            [x_ref[p + dk] for dk in range(4)], axis=-1)         # (TB, 4P)
        cv = jnp.dot(window, w_conv,
                     preferred_element_type=jnp.float32)         # (TB, P) f32
        t = cv + pc_ref[p:p + 1, :]      # invalid (position, channel) -> -1e30
        m_acc = t if m_acc is None else jnp.maximum(m_acc, t)
        if max_mean:
            c = cv * pc_ref[s_out + p:s_out + p + 1, :]
            s_acc = c if s_acc is None else s_acc + c

    # Biases post-pool: max(x+b) = max(x)+b, mean(x+b) = mean(x)+b.
    b_conv = bpack_ref[0:1, :]
    if max_mean:
        pooled = m_acc + s_acc + 2.0 * b_conv
    else:
        pooled = m_acc + b_conv
    doc = jnp.maximum(pooled, 0.0)                               # (TB, P) f32

    # Classifier MLP: Linear -> ReLU -> Linear -> ReLU -> Linear.
    h = jnp.maximum(
        jnp.dot(doc.astype(cdt), w12_ref[0],
                preferred_element_type=jnp.float32) + bpack_ref[1:2, :], 0.0)
    h = jnp.maximum(
        jnp.dot(h.astype(cdt), w12_ref[1],
                preferred_element_type=jnp.float32) + bpack_ref[2:3, :], 0.0)
    out_ref[...] = (
        jnp.dot(h.astype(cdt), wl3_ref[...],
                preferred_element_type=jnp.float32) + bl3_ref[...])


def _batch_tiling(batch, seq, p_width, itemsize):
    """TB: multiple of 8 sublanes, <= 256 MXU rows, grid always >= 2 steps."""
    tb_cap = 256                       # full MXU rows on v6e/v7x; fine on v5e
    vmem_budget = 8 * 1024 * 1024      # budget for the double-buffered x tile
    b8 = _round_up(max(batch, 1), 8)
    tb = max(8, min(tb_cap, _round_up(_cdiv(b8, 2), 8)))
    while tb > 8 and 2 * (seq + 2) * tb * p_width * itemsize > vmem_budget:
        tb = _round_up(tb // 2, 8)
    grid_b = max(2, _cdiv(b8, tb))     # >= 2 so v7x megacore uses both TCs
    return tb, grid_b, tb * grid_b


def cnn_pooling_classifier(x, params, pooling_ops="max",
                           compute_dtype=jnp.bfloat16):
    if pooling_ops not in ("max", "max_mean"):
        raise ValueError(pooling_ops)
    B, S, D = x.shape
    assert D % 3 == 0 and S >= 4
    C = D // 3
    E = params["wl3"].shape[1]

    P = _round_up(D, 128)              # padded feature / hidden / channel width
    Ep = _round_up(E, 128)             # padded output width (lane-dense store)
    s_out = S - 1                      # conv window positions evaluated
    Sp = S + 2                         # 2 zero rows so every k=4 window is in range

    # ---- host-side packing: fuse the 3 convs into one (4*P, P) weight -------
    wconv = jnp.zeros((4 * P, P), jnp.float32)
    for gi, k in enumerate((2, 3, 4)):
        w = params[f"w{k}"]                                    # (k, D, C)
        for dk in range(k):
            wconv = wconv.at[dk * P:dk * P + D,
                             gi * C:(gi + 1) * C].set(w[dk])
    b_conv = jnp.zeros((1, P), jnp.float32).at[:, :3 * C].set(
        jnp.concatenate([params["bc2"], params["bc3"], params["bc4"]], axis=1))
    bl1 = jnp.zeros((1, P), jnp.float32).at[:, :D].set(params["bl1"])
    bl2 = jnp.zeros((1, P), jnp.float32).at[:, :D].set(params["bl2"])
    bias_pack = jnp.concatenate([b_conv, bl1, bl2], axis=0)    # (3, P) f32
    w12 = jnp.zeros((2, P, P), jnp.float32)
    w12 = w12.at[0, :D, :D].set(params["wl1"]).at[1, :D, :D].set(params["wl2"])
    wl3 = jnp.zeros((P, Ep), jnp.float32).at[:D, :E].set(params["wl3"])
    bl3 = jnp.zeros((1, Ep), jnp.float32).at[:, :E].set(params["bl3"])

    # ---- pooling constants: pure numpy, nothing computed in-kernel ----------
    ks = np.full((P,), 2, np.int64)
    ks[C:2 * C] = 3
    ks[2 * C:3 * C] = 4                # padded channels keep k=2 (weights are 0)
    pos = np.arange(s_out)[:, None]
    valid = (pos + ks[None, :]) <= S                              # (s_out, P)
    add_mask = np.where(valid, 0.0, -1e30).astype(np.float32)
    cnt = (S + 1 - ks).astype(np.float32)                         # per-channel
    mean_w = (valid / cnt[None, :]).astype(np.float32)
    pool_consts = jnp.asarray(np.concatenate([add_mask, mean_w], axis=0))

    # ---- batch tiling / padding ---------------------------------------------
    itemsize = np.dtype(compute_dtype).itemsize
    TB, grid_b, Bpad = _batch_tiling(B, S, P, itemsize)

    # Seq-major layout: batch becomes the MXU row (M) dimension in the kernel.
    x_pad = jnp.pad(x, ((0, Bpad - B), (0, 2), (0, P - D)))
    x_t = jnp.transpose(x_pad, (1, 0, 2)).astype(compute_dtype)  # (Sp, Bpad, P)

    kernel = functools.partial(_cnn_pool_cls_kernel,
                               pooling_ops=pooling_ops, s_out=s_out)
    out = pl.pallas_call(
        kernel,
        out_shape=jax.ShapeDtypeStruct((Bpad, Ep), jnp.float32),
        grid_spec=pltpu.PrefetchScalarGridSpec(
            num_scalar_prefetch=0,
            grid=(grid_b,),
            in_specs=[
                pl.BlockSpec((Sp, TB, P), lambda i: (0, i, 0)),   # x tile
                pl.BlockSpec((4 * P, P), lambda i: (0, 0)),       # fused conv W
                pl.BlockSpec((2, P, P), lambda i: (0, 0, 0)),     # wl1 | wl2
                pl.BlockSpec((P, Ep), lambda i: (0, 0)),          # wl3
                pl.BlockSpec((3, P), lambda i: (0, 0)),           # conv/l1/l2 b
                pl.BlockSpec((1, Ep), lambda i: (0, 0)),          # bl3
                pl.BlockSpec((2 * s_out, P), lambda i: (0, 0)),   # pooling masks
            ],
            out_specs=pl.BlockSpec((TB, Ep), lambda i: (i, 0)),
        ),
        compiler_params=pltpu.CompilerParams(
            dimension_semantics=("parallel",)),   # batch tiles shard over TCs
    )(x_t, wconv.astype(compute_dtype), w12.astype(compute_dtype),
      wl3.astype(compute_dtype), bias_pack, bl3, pool_consts)
    return out[:B, :E]


def init_params(key, d_model, emb_dim):
    """Deterministic xavier-uniform weights / small-uniform biases."""
    c = d_model // 3
    keys = jax.random.split(key, 12)

    def xavier(k, shape, fan_in, fan_out):
        bound = (6.0 / (fan_in + fan_out)) ** 0.5
        return jax.random.uniform(k, shape, jnp.float32, -bound, bound)

    def bias(k, n, fan_in):
        bound = 1.0 / (fan_in ** 0.5)
        return jax.random.uniform(k, (1, n), jnp.float32, -bound, bound)

    p = {}
    for i, ksz in enumerate((2, 3, 4)):
        fan_in = 1 * ksz * d_model            # Conv2d fan_in
        fan_out = c * ksz * d_model           # Conv2d fan_out
        p[f"w{ksz}"] = xavier(keys[2 * i], (ksz, d_model, c), fan_in, fan_out)
        p[f"bc{ksz}"] = bias(keys[2 * i + 1], c, fan_in)
    dims = [(d_model, d_model), (d_model, d_model), (d_model, emb_dim)]
    for i, (din, dout) in enumerate(dims, start=1):
        p[f"wl{i}"] = xavier(keys[6 + 2 * (i - 1)], (din, dout), din, dout)
        p[f"bl{i}"] = bias(keys[7 + 2 * (i - 1)], dout, din)
    return p


def reference(x, p, pooling_ops="max"):
    """Pure-JAX reference of the PyTorch forward for validation."""
    B, S, D = x.shape

    def conv_pool(w, b, k):
        s_out = S - k + 1
        acc = jnp.zeros((B, s_out, w.shape[-1]), jnp.float32)
        for dk in range(k):
            acc = acc + jnp.einsum("bsd,dc->bsc", x[:, dk:dk + s_out, :], w[dk])
        acc = acc + b[None]
        m = jnp.max(acc, axis=1)
        if pooling_ops == "max":
            return m
        return m + jnp.mean(acc, axis=1)

    doc = jax.nn.relu(jnp.concatenate(
        [conv_pool(p["w2"], p["bc2"], 2),
         conv_pool(p["w3"], p["bc3"], 3),
         conv_pool(p["w4"], p["bc4"], 4)], axis=1))
    h = jax.nn.relu(doc @ p["wl1"] + p["bl1"])
    h = jax.nn.relu(h @ p["wl2"] + p["bl2"])
    return h @ p["wl3"] + p["bl3"]


if __name__ == "__main__":
    d_model, emb_dim = 96, 32        # d_model divisible by 3 -> c = 32
    B, S = 2, 8

    key = jax.random.PRNGKey(0)
    kx, kp = jax.random.split(key)
    x = jax.random.normal(kx, (B, S, d_model), dtype=jnp.float32)
    params = init_params(kp, d_model, emb_dim)

    # Validate the f32 path tightly, then the bf16 (production) path loosely.
    tol = {jnp.float32: 2e-2, jnp.bfloat16: 1e-1}
    for pooling_ops in ("max", "max_mean"):
        ref = reference(x, params, pooling_ops)
        for dtype in (jnp.float32, jnp.bfloat16):
            out = jax.block_until_ready(
                cnn_pooling_classifier(x, params, pooling_ops,
                                       compute_dtype=dtype))
            assert out.shape == (B, emb_dim), out.shape
            err = float(jnp.max(jnp.abs(out - ref)))
            assert err <= tol[dtype], (pooling_ops, str(dtype), err)
    print("KERNEL_OK")
</pallas_src>

<mosaic_0001>
module attributes {stable_mosaic.version = 11 : i64} {
  func.func @_cnn_pool_cls_kernel(%arg0: i32, %arg1: memref<10x8x128xf32, #tpu.memory_space<vmem>>, %arg2: memref<512x128xf32, #tpu.memory_space<vmem>>, %arg3: memref<2x128x128xf32, #tpu.memory_space<vmem>>, %arg4: memref<128x128xf32, #tpu.memory_space<vmem>>, %arg5: memref<3x128xf32, #tpu.memory_space<vmem>>, %arg6: memref<1x128xf32, #tpu.memory_space<vmem>>, %arg7: memref<14x128xf32, #tpu.memory_space<vmem>>, %arg8: memref<8x128xf32, #tpu.memory_space<vmem>>) attributes {dimension_semantics = [#tpu.dimension_semantics<parallel>], iteration_bounds = array<i64: 2>, scalar_prefetch = 0 : i64, scratch_operands = 0 : i64, tpu.core_type = #tpu.core_type<tc>, window_params = [{transform_indices = @transform_0, window_bounds = array<i64: 10, 8, 128>}, {pipeline_mode = #tpu.pipeline_mode<synchronous>, transform_indices = @transform_1, window_bounds = array<i64: 512, 128>}, {pipeline_mode = #tpu.pipeline_mode<synchronous>, transform_indices = @transform_2, window_bounds = array<i64: 2, 128, 128>}, {pipeline_mode = #tpu.pipeline_mode<synchronous>, transform_indices = @transform_3, window_bounds = array<i64: 128, 128>}, {pipeline_mode = #tpu.pipeline_mode<synchronous>, transform_indices = @transform_4, window_bounds = array<i64: 3, 128>}, {pipeline_mode = #tpu.pipeline_mode<synchronous>, transform_indices = @transform_5, window_bounds = array<i64: 1, 128>}, {pipeline_mode = #tpu.pipeline_mode<synchronous>, transform_indices = @transform_6, window_bounds = array<i64: 14, 128>}, {transform_indices = @transform_7, window_bounds = array<i64: 8, 128>}]} {
    %c0 = arith.constant 0 : index
    %c0_0 = arith.constant 0 : index
    %0 = vector.load %arg2[%c0, %c0_0] : memref<512x128xf32, #tpu.memory_space<vmem>>, vector<512x128xf32>
    %c0_1 = arith.constant 0 : index
    %c0_2 = arith.constant 0 : index
    %c0_3 = arith.constant 0 : index
    %1 = vector.load %arg1[%c0_1, %c0_2, %c0_3] : memref<10x8x128xf32, #tpu.memory_space<vmem>>, vector<1x8x128xf32>
    %2 = vector.shape_cast %1 : vector<1x8x128xf32> to vector<8x128xf32>
    %c1 = arith.constant 1 : index
    %c0_4 = arith.constant 0 : index
    %c0_5 = arith.constant 0 : index
    %3 = vector.load %arg1[%c1, %c0_4, %c0_5] : memref<10x8x128xf32, #tpu.memory_space<vmem>>, vector<1x8x128xf32>
    %4 = vector.shape_cast %3 : vector<1x8x128xf32> to vector<8x128xf32>
    %c2 = arith.constant 2 : index
    %c0_6 = arith.constant 0 : index
    %c0_7 = arith.constant 0 : index
    %5 = vector.load %arg1[%c2, %c0_6, %c0_7] : memref<10x8x128xf32, #tpu.memory_space<vmem>>, vector<1x8x128xf32>
    %6 = vector.shape_cast %5 : vector<1x8x128xf32> to vector<8x128xf32>
    %c3 = arith.constant 3 : index
    %c0_8 = arith.constant 0 : index
    %c0_9 = arith.constant 0 : index
    %7 = vector.load %arg1[%c3, %c0_8, %c0_9] : memref<10x8x128xf32, #tpu.memory_space<vmem>>, vector<1x8x128xf32>
    %8 = vector.shape_cast %7 : vector<1x8x128xf32> to vector<8x128xf32>
    %9 = tpu.concatenate %2, %4, %6, %8 in 1 : vector<8x128xf32>, vector<8x128xf32>, vector<8x128xf32>, vector<8x128xf32> -> vector<8x512xf32>
    %cst = arith.constant dense<0.000000e+00> : vector<8x128xf32>
    %10 = tpu.matmul %9, %0, %cst {dimension_numbers = #tpu.dot_dimension_numbers<[1], [0], [0], [1], [0, 0, 1, 1], [], []>} : vector<8x512xf32>, vector<512x128xf32>, vector<8x128xf32> -> vector<8x128xf32>
    %c0_10 = arith.constant 0 : index
    %c0_11 = arith.constant 0 : index
    %11 = vector.load %arg7[%c0_10, %c0_11] : memref<14x128xf32, #tpu.memory_space<vmem>>, vector<1x128xf32>
    %12 = vector.broadcast %11 : vector<1x128xf32> to vector<8x128xf32>
    %13 = arith.addf %10, %12 : vector<8x128xf32>
    %c1_12 = arith.constant 1 : index
    %c0_13 = arith.constant 0 : index
    %c0_14 = arith.constant 0 : index
    %14 = vector.load %arg1[%c1_12, %c0_13, %c0_14] : memref<10x8x128xf32, #tpu.memory_space<vmem>>, vector<1x8x128xf32>
    %15 = vector.shape_cast %14 : vector<1x8x128xf32> to vector<8x128xf32>
    %c2_15 = arith.constant 2 : index
    %c0_16 = arith.constant 0 : index
    %c0_17 = arith.constant 0 : index
    %16 = vector.load %arg1[%c2_15, %c0_16, %c0_17] : memref<10x8x128xf32, #tpu.memory_space<vmem>>, vector<1x8x128xf32>
    %17 = vector.shape_cast %16 : vector<1x8x128xf32> to vector<8x128xf32>
    %c3_18 = arith.constant 3 : index
    %c0_19 = arith.constant 0 : index
    %c0_20 = arith.constant 0 : index
    %18 = vector.load %arg1[%c3_18, %c0_19, %c0_20] : memref<10x8x128xf32, #tpu.memory_space<vmem>>, vector<1x8x128xf32>
    %19 = vector.shape_cast %18 : vector<1x8x128xf32> to vector<8x128xf32>
    %c4 = arith.constant 4 : index
    %c0_21 = arith.constant 0 : index
    %c0_22 = arith.constant 0 : index
    %20 = vector.load %arg1[%c4, %c0_21, %c0_22] : memref<10x8x128xf32, #tpu.memory_space<vmem>>, vector<1x8x128xf32>
    %21 = vector.shape_cast %20 : vector<1x8x128xf32> to vector<8x128xf32>
    %22 = tpu.concatenate %15, %17, %19, %21 in 1 : vector<8x128xf32>, vector<8x128xf32>, vector<8x128xf32>, vector<8x128xf32> -> vector<8x512xf32>
    %cst_23 = arith.constant dense<0.000000e+00> : vector<8x128xf32>
    %23 = tpu.matmul %22, %0, %cst_23 {dimension_numbers = #tpu.dot_dimension_numbers<[1], [0], [0], [1], [0, 0, 1, 1], [], []>} : vector<8x512xf32>, vector<512x128xf32>, vector<8x128xf32> -> vector<8x128xf32>
    %c1_24 = arith.constant 1 : index
    %c0_25 = arith.constant 0 : index
    %24 = vector.load %arg7[%c1_24, %c0_25] : memref<14x128xf32, #tpu.memory_space<vmem>>, vector<1x128xf32>
    %25 = vector.broadcast %24 : vector<1x128xf32> to vector<8x128xf32>
    %26 = arith.addf %23, %25 : vector<8x128xf32>
    %27 = arith.maximumf %13, %26 : vector<8x128xf32>
    %c2_26 = arith.constant 2 : index
    %c0_27 = arith.constant 0 : index
    %c0_28 = arith.constant 0 : index
    %28 = vector.load %arg1[%c2_26, %c0_27, %c0_28] : memref<10x8x128xf32, #tpu.memory_space<vmem>>, vector<1x8x128xf32>
    %29 = vector.shape_cast %28 : vector<1x8x128xf32> to vector<8x128xf32>
    %c3_29 = arith.constant 3 : index
    %c0_30 = arith.constant 0 : index
    %c0_31 = arith.constant 0 : index
    %30 = vector.load %arg1[%c3_29, %c0_30, %c0_31] : memref<10x8x128xf32, #tpu.memory_space<vmem>>, vector<1x8x128xf32>
    %31 = vector.shape_cast %30 : vector<1x8x128xf32> to vector<8x128xf32>
    %c4_32 = arith.constant 4 : index
    %c0_33 = arith.constant 0 : index
    %c0_34 = arith.constant 0 : index
    %32 = vector.load %arg1[%c4_32, %c0_33, %c0_34] : memref<10x8x128xf32, #tpu.memory_space<vmem>>, vector<1x8x128xf32>
    %33 = vector.shape_cast %32 : vector<1x8x128xf32> to vector<8x128xf32>
    %c5 = arith.constant 5 : index
    %c0_35 = arith.constant 0 : index
    %c0_36 = arith.constant 0 : index
    %34 = vector.load %arg1[%c5, %c0_35, %c0_36] : memref<10x8x128xf32, #tpu.memory_space<vmem>>, vector<1x8x128xf32>
    %35 = vector.shape_cast %34 : vector<1x8x128xf32> to vector<8x128xf32>
    %36 = tpu.concatenate %29, %31, %33, %35 in 1 : vector<8x128xf32>, vector<8x128xf32>, vector<8x128xf32>, vector<8x128xf32> -> vector<8x512xf32>
    %cst_37 = arith.constant dense<0.000000e+00> : vector<8x128xf32>
    %37 = tpu.matmul %36, %0, %cst_37 {dimension_numbers = #tpu.dot_dimension_numbers<[1], [0], [0], [1], [0, 0, 1, 1], [], []>} : vector<8x512xf32>, vector<512x128xf32>, vector<8x128xf32> -> vector<8x128xf32>
    %c2_38 = arith.constant 2 : index
    %c0_39 = arith.constant 0 : index
    %38 = vector.load %arg7[%c2_38, %c0_39] : memref<14x128xf32, #tpu.memory_space<vmem>>, vector<1x128xf32>
    %39 = vector.broadcast %38 : vector<1x128xf32> to vector<8x128xf32>
    %40 = arith.addf %37, %39 : vector<8x128xf32>
    %41 = arith.maximumf %27, %40 : vector<8x128xf32>
    %c3_40 = arith.constant 3 : index
    %c0_41 = arith.constant 0 : index
    %c0_42 = arith.constant 0 : index
    %42 = vector.load %arg1[%c3_40, %c0_41, %c0_42] : memref<10x8x128xf32, #tpu.memory_space<vmem>>, vector<1x8x128xf32>
    %43 = vector.shape_cast %42 : vector<1x8x128xf32> to vector<8x128xf32>
    %c4_43 = arith.constant 4 : index
    %c0_44 = arith.constant 0 : index
    %c0_45 = arith.constant 0 : index
    %44 = vector.load %arg1[%c4_43, %c0_44, %c0_45] : memref<10x8x128xf32, #tpu.memory_space<vmem>>, vector<1x8x128xf32>
    %45 = vector.shape_cast %44 : vector<1x8x128xf32> to vector<8x128xf32>
    %c5_46 = arith.constant 5 : index
    %c0_47 = arith.constant 0 : index
    %c0_48 = arith.constant 0 : index
    %46 = vector.load %arg1[%c5_46, %c0_47, %c0_48] : memref<10x8x128xf32, #tpu.memory_space<vmem>>, vector<1x8x128xf32>
    %47 = vector.shape_cast %46 : vector<1x8x128xf32> to vector<8x128xf32>
    %c6 = arith.constant 6 : index
    %c0_49 = arith.constant 0 : index
    %c0_50 = arith.constant 0 : index
    %48 = vector.load %arg1[%c6, %c0_49, %c0_50] : memref<10x8x128xf32, #tpu.memory_space<vmem>>, vector<1x8x128xf32>
    %49 = vector.shape_cast %48 : vector<1x8x128xf32> to vector<8x128xf32>
    %50 = tpu.concatenate %43, %45, %47, %49 in 1 : vector<8x128xf32>, vector<8x128xf32>, vector<8x128xf32>, vector<8x128xf32> -> vector<8x512xf32>
    %cst_51 = arith.constant dense<0.000000e+00> : vector<8x128xf32>
    %51 = tpu.matmul %50, %0, %cst_51 {dimension_numbers = #tpu.dot_dimension_numbers<[1], [0], [0], [1], [0, 0, 1, 1], [], []>} : vector<8x512xf32>, vector<512x128xf32>, vector<8x128xf32> -> vector<8x128xf32>
    %c3_52 = arith.constant 3 : index
    %c0_53 = arith.constant 0 : index
    %52 = vector.load %arg7[%c3_52, %c0_53] : memref<14x128xf32, #tpu.memory_space<vmem>>, vector<1x128xf32>
    %53 = vector.broadcast %52 : vector<1x128xf32> to vector<8x128xf32>
    %54 = arith.addf %51, %53 : vector<8x128xf32>
    %55 = arith.maximumf %41, %54 : vector<8x128xf32>
    %c4_54 = arith.constant 4 : index
    %c0_55 = arith.constant 0 : index
    %c0_56 = arith.constant 0 : index
    %56 = vector.load %arg1[%c4_54, %c0_55, %c0_56] : memref<10x8x128xf32, #tpu.memory_space<vmem>>, vector<1x8x128xf32>
    %57 = vector.shape_cast %56 : vector<1x8x128xf32> to vector<8x128xf32>
    %c5_57 = arith.constant 5 : index
    %c0_58 = arith.constant 0 : index
    %c0_59 = arith.constant 0 : index
    %58 = vector.load %arg1[%c5_57, %c0_58, %c0_59] : memref<10x8x128xf32, #tpu.memory_space<vmem>>, vector<1x8x128xf32>
    %59 = vector.shape_cast %58 : vector<1x8x128xf32> to vector<8x128xf32>
    %c6_60 = arith.constant 6 : index
    %c0_61 = arith.constant 0 : index
    %c0_62 = arith.constant 0 : index
    %60 = vector.load %arg1[%c6_60, %c0_61, %c0_62] : memref<10x8x128xf32, #tpu.memory_space<vmem>>, vector<1x8x128xf32>
    %61 = vector.shape_cast %60 : vector<1x8x128xf32> to vector<8x128xf32>
    %c7 = arith.constant 7 : index
    %c0_63 = arith.constant 0 : index
    %c0_64 = arith.constant 0 : index
    %62 = vector.load %arg1[%c7, %c0_63, %c0_64] : memref<10x8x128xf32, #tpu.memory_space<vmem>>, vector<1x8x128xf32>
    %63 = vector.shape_cast %62 : vector<1x8x128xf32> to vector<8x128xf32>
    %64 = tpu.concatenate %57, %59, %61, %63 in 1 : vector<8x128xf32>, vector<8x128xf32>, vector<8x128xf32>, vector<8x128xf32> -> vector<8x512xf32>
    %cst_65 = arith.constant dense<0.000000e+00> : vector<8x128xf32>
    %65 = tpu.matmul %64, %0, %cst_65 {dimension_numbers = #tpu.dot_dimension_numbers<[1], [0], [0], [1], [0, 0, 1, 1], [], []>} : vector<8x512xf32>, vector<512x128xf32>, vector<8x128xf32> -> vector<8x128xf32>
    %c4_66 = arith.constant 4 : index
    %c0_67 = arith.constant 0 : index
    %66 = vector.load %arg7[%c4_66, %c0_67] : memref<14x128xf32, #tpu.memory_space<vmem>>, vector<1x128xf32>
    %67 = vector.broadcast %66 : vector<1x128xf32> to vector<8x128xf32>
    %68 = arith.addf %65, %67 : vector<8x128xf32>
    %69 = arith.maximumf %55, %68 : vector<8x128xf32>
    %c5_68 = arith.constant 5 : index
    %c0_69 = arith.constant 0 : index
    %c0_70 = arith.constant 0 : index
    %70 = vector.load %arg1[%c5_68, %c0_69, %c0_70] : memref<10x8x128xf32, #tpu.memory_space<vmem>>, vector<1x8x128xf32>
    %71 = vector.shape_cast %70 : vector<1x8x128xf32> to vector<8x128xf32>
    %c6_71 = arith.constant 6 : index
    %c0_72 = arith.constant 0 : index
    %c0_73 = arith.constant 0 : index
    %72 = vector.load %arg1[%c6_71, %c0_72, %c0_73] : memref<10x8x128xf32, #tpu.memory_space<vmem>>, vector<1x8x128xf32>
    %73 = vector.shape_cast %72 : vector<1x8x128xf32> to vector<8x128xf32>
    %c7_74 = arith.constant 7 : index
    %c0_75 = arith.constant 0 : index
    %c0_76 = arith.constant 0 : index
    %74 = vector.load %arg1[%c7_74, %c0_75, %c0_76] : memref<10x8x128xf32, #tpu.memory_space<vmem>>, vector<1x8x128xf32>
    %75 = vector.shape_cast %74 : vector<1x8x128xf32> to vector<8x128xf32>
    %c8 = arith.constant 8 : index
    %c0_77 = arith.constant 0 : index
    %c0_78 = arith.constant 0 : index
    %76 = vector.load %arg1[%c8, %c0_77, %c0_78] : memref<10x8x128xf32, #tpu.memory_space<vmem>>, vector<1x8x128xf32>
    %77 = vector.shape_cast %76 : vector<1x8x128xf32> to vector<8x128xf32>
    %78 = tpu.concatenate %71, %73, %75, %77 in 1 : vector<8x128xf32>, vector<8x128xf32>, vector<8x128xf32>, vector<8x128xf32> -> vector<8x512xf32>
    %cst_79 = arith.constant dense<0.000000e+00> : vector<8x128xf32>
    %79 = tpu.matmul %78, %0, %cst_79 {dimension_numbers = #tpu.dot_dimension_numbers<[1], [0], [0], [1], [0, 0, 1, 1], [], []>} : vector<8x512xf32>, vector<512x128xf32>, vector<8x128xf32> -> vector<8x128xf32>
    %c5_80 = arith.constant 5 : index
    %c0_81 = arith.constant 0 : index
    %80 = vector.load %arg7[%c5_80, %c0_81] : memref<14x128xf32, #tpu.memory_space<vmem>>, vector<1x128xf32>
    %81 = vector.broadcast %80 : vector<1x128xf32> to vector<8x128xf32>
    %82 = arith.addf %79, %81 : vector<8x128xf32>
    %83 = arith.maximumf %69, %82 : vector<8x128xf32>
    %c6_82 = arith.constant 6 : index
    %c0_83 = arith.constant 0 : index
    %c0_84 = arith.constant 0 : index
    %84 = vector.load %arg1[%c6_82, %c0_83, %c0_84] : memref<10x8x128xf32, #tpu.memory_space<vmem>>, vector<1x8x128xf32>
    %85 = vector.shape_cast %84 : vector<1x8x128xf32> to vector<8x128xf32>
    %c7_85 = arith.constant 7 : index
    %c0_86 = arith.constant 0 : index
    %c0_87 = arith.constant 0 : index
    %86 = vector.load %arg1[%c7_85, %c0_86, %c0_87] : memref<10x8x128xf32, #tpu.memory_space<vmem>>, vector<1x8x128xf32>
    %87 = vector.shape_cast %86 : vector<1x8x128xf32> to vector<8x128xf32>
    %c8_88 = arith.constant 8 : index
    %c0_89 = arith.constant 0 : index
    %c0_90 = arith.constant 0 : index
    %88 = vector.load %arg1[%c8_88, %c0_89, %c0_90] : memref<10x8x128xf32, #tpu.memory_space<vmem>>, vector<1x8x128xf32>
    %89 = vector.shape_cast %88 : vector<1x8x128xf32> to vector<8x128xf32>
    %c9 = arith.constant 9 : index
    %c0_91 = arith.constant 0 : index
    %c0_92 = arith.constant 0 : index
    %90 = vector.load %arg1[%c9, %c0_91, %c0_92] : memref<10x8x128xf32, #tpu.memory_space<vmem>>, vector<1x8x128xf32>
    %91 = vector.shape_cast %90 : vector<1x8x128xf32> to vector<8x128xf32>
    %92 = tpu.concatenate %85, %87, %89, %91 in 1 : vector<8x128xf32>, vector<8x128xf32>, vector<8x128xf32>, vector<8x128xf32> -> vector<8x512xf32>
    %cst_93 = arith.constant dense<0.000000e+00> : vector<8x128xf32>
    %93 = tpu.matmul %92, %0, %cst_93 {dimension_numbers = #tpu.dot_dimension_numbers<[1], [0], [0], [1], [0, 0, 1, 1], [], []>} : vector<8x512xf32>, vector<512x128xf32>, vector<8x128xf32> -> vector<8x128xf32>
    %c6_94 = arith.constant 6 : index
    %c0_95 = arith.constant 0 : index
    %94 = vector.load %arg7[%c6_94, %c0_95] : memref<14x128xf32, #tpu.memory_space<vmem>>, vector<1x128xf32>
    %95 = vector.broadcast %94 : vector<1x128xf32> to vector<8x128xf32>
    %96 = arith.addf %93, %95 : vector<8x128xf32>
    %97 = arith.maximumf %83, %96 : vector<8x128xf32>
    %c0_96 = arith.constant 0 : index
    %c0_97 = arith.constant 0 : index
    %98 = vector.load %arg5[%c0_96, %c0_97] : memref<3x128xf32, #tpu.memory_space<vmem>>, vector<1x128xf32>
    %99 = vector.broadcast %98 : vector<1x128xf32> to vector<8x128xf32>
    %100 = arith.addf %97, %99 : vector<8x128xf32>
    %cst_98 = arith.constant 0.000000e+00 : f32
    %101 = vector.broadcast %cst_98 : f32 to vector<8x128xf32>
    %102 = arith.maximumf %100, %101 : vector<8x128xf32>
    %c0_99 = arith.constant 0 : index
    %c0_100 = arith.constant 0 : index
    %c0_101 = arith.constant 0 : index
    %103 = vector.load %arg3[%c0_99, %c0_100, %c0_101] : memref<2x128x128xf32, #tpu.memory_space<vmem>>, vector<1x128x128xf32>
    %104 = vector.shape_cast %103 : vector<1x128x128xf32> to vector<128x128xf32>
    %cst_102 = arith.constant dense<0.000000e+00> : vector<8x128xf32>
    %105 = tpu.matmul %102, %104, %cst_102 {dimension_numbers = #tpu.dot_dimension_numbers<[1], [0], [0], [1], [0, 0, 1, 1], [], []>} : vector<8x128xf32>, vector<128x128xf32>, vector<8x128xf32> -> vector<8x128xf32>
    %c1_103 = arith.constant 1 : index
    %c0_104 = arith.constant 0 : index
    %106 = vector.load %arg5[%c1_103, %c0_104] : memref<3x128xf32, #tpu.memory_space<vmem>>, vector<1x128xf32>
    %107 = vector.broadcast %106 : vector<1x128xf32> to vector<8x128xf32>
    %108 = arith.addf %105, %107 : vector<8x128xf32>
    %cst_105 = arith.constant 0.000000e+00 : f32
    %109 = vector.broadcast %cst_105 : f32 to vector<8x128xf32>
    %110 = arith.maximumf %108, %109 : vector<8x128xf32>
    %c1_106 = arith.constant 1 : index
    %c0_107 = arith.constant 0 : index
    %c0_108 = arith.constant 0 : index
    %111 = vector.load %arg3[%c1_106, %c0_107, %c0_108] : memref<2x128x128xf32, #tpu.memory_space<vmem>>, vector<1x128x128xf32>
    %112 = vector.shape_cast %111 : vector<1x128x128xf32> to vector<128x128xf32>
    %cst_109 = arith.constant dense<0.000000e+00> : vector<8x128xf32>
    %113 = tpu.matmul %110, %112, %cst_109 {dimension_numbers = #tpu.dot_dimension_numbers<[1], [0], [0], [1], [0, 0, 1, 1], [], []>} : vector<8x128xf32>, vector<128x128xf32>, vector<8x128xf32> -> vector<8x128xf32>
    %c2_110 = arith.constant 2 : index
    %c0_111 = arith.constant 0 : index
    %114 = vector.load %arg5[%c2_110, %c0_111] : memref<3x128xf32, #tpu.memory_space<vmem>>, vector<1x128xf32>
    %115 = vector.broadcast %114 : vector<1x128xf32> to vector<8x128xf32>
    %116 = arith.addf %113, %115 : vector<8x128xf32>
    %cst_112 = arith.constant 0.000000e+00 : f32
    %117 = vector.broadcast %cst_112 : f32 to vector<8x128xf32>
    %118 = arith.maximumf %116, %117 : vector<8x128xf32>
    %c0_113 = arith.constant 0 : index
    %c0_114 = arith.constant 0 : index
    %119 = vector.load %arg4[%c0_113, %c0_114] : memref<128x128xf32, #tpu.memory_space<vmem>>, vector<128x128xf32>
    %cst_115 = arith.constant dense<0.000000e+00> : vector<8x128xf32>
    %120 = tpu.matmul %118, %119, %cst_115 {dimension_numbers = #tpu.dot_dimension_numbers<[1], [0], [0], [1], [0, 0, 1, 1], [], []>} : vector<8x128xf32>, vector<128x128xf32>, vector<8x128xf32> -> vector<8x128xf32>
    %c0_116 = arith.constant 0 : index
    %c0_117 = arith.constant 0 : index
    %121 = vector.load %arg6[%c0_116, %c0_117] : memref<1x128xf32, #tpu.memory_space<vmem>>, vector<1x128xf32>
    %122 = vector.broadcast %121 : vector<1x128xf32> to vector<8x128xf32>
    %123 = arith.addf %120, %122 : vector<8x128xf32>
    %c0_118 = arith.constant 0 : index
    %c0_119 = arith.constant 0 : index
    %124 = vector.load %arg8[%c0_118, %c0_119] : memref<8x128xf32, #tpu.memory_space<vmem>>, vector<8x128xf32>
    tpu.vector_store %arg8[%c0_118, %c0_119], %123 {strides = array<i32>} : memref<8x128xf32, #tpu.memory_space<vmem>>, vector<8x128xf32>,
    return
  }
  func.func @transform_0(%arg0: i32) -> (i32, i32, i32) {
    %c0_i32 = arith.constant 0 : i32
    %c0_i32_0 = arith.constant 0 : i32
    %c0_i32_1 = arith.constant 0 : i32
    return %c0_i32, %arg0, %c0_i32_0 : i32, i32, i32
  }
  func.func @transform_1(%arg0: i32) -> (i32, i32) {
    %c0_i32 = arith.constant 0 : i32
    %c0_i32_0 = arith.constant 0 : i32
    %c0_i32_1 = arith.constant 0 : i32
    return %c0_i32, %c0_i32_0 : i32, i32
  }
  func.func @transform_2(%arg0: i32) -> (i32, i32, i32) {
    %c0_i32 = arith.constant 0 : i32
    %c0_i32_0 = arith.constant 0 : i32
    %c0_i32_1 = arith.constant 0 : i32
    %c0_i32_2 = arith.constant 0 : i32
    return %c0_i32, %c0_i32_0, %c0_i32_1 : i32, i32, i32
  }
  func.func @transform_3(%arg0: i32) -> (i32, i32) {
    %c0_i32 = arith.constant 0 : i32
    %c0_i32_0 = arith.constant 0 : i32
    %c0_i32_1 = arith.constant 0 : i32
    return %c0_i32, %c0_i32_0 : i32, i32
  }
  func.func @transform_4(%arg0: i32) -> (i32, i32) {
    %c0_i32 = arith.constant 0 : i32
    %c0_i32_0 = arith.constant 0 : i32
    %c0_i32_1 = arith.constant 0 : i32
    return %c0_i32, %c0_i32_0 : i32, i32
  }
  func.func @transform_5(%arg0: i32) -> (i32, i32) {
    %c0_i32 = arith.constant 0 : i32
    %c0_i32_0 = arith.constant 0 : i32
    %c0_i32_1 = arith.constant 0 : i32
    return %c0_i32, %c0_i32_0 : i32, i32
  }
  func.func @transform_6(%arg0: i32) -> (i32, i32) {
    %c0_i32 = arith.constant 0 : i32
    %c0_i32_0 = arith.constant 0 : i32
    %c0_i32_1 = arith.constant 0 : i32
    return %c0_i32, %c0_i32_0 : i32, i32
  }
  func.func @transform_7(%arg0: i32) -> (i32, i32) {
    %c0_i32 = arith.constant 0 : i32
    %c0_i32_0 = arith.constant 0 : i32
    return %arg0, %c0_i32 : i32, i32
  }
}

</mosaic_0001>

<llo_original>
// kernel: tpu_custom_call.1
$region0: #{tpu_custom_call.1}
  #allocation0 [shape = 'u32[]', space=smem, size = 0x4, offset = 0x4, fixed_abs, tag = 'smem constant byte address 0x4 - core index']
  #allocation1 [shape = 'u32[72,128]{1,0:T(1,128)}', space=vmem, size = 0x9000, scoped, tag = 'internal scratch']
  %s0 = inlined_call_operand.hbm [shape: f32[10,16,128], index: 0, kind: input, shape index: {}]
  %s1 = inlined_call_operand.hbm [shape: f32[512,128], index: 1, kind: input, shape index: {}]
  %s2 = inlined_call_operand.hbm [shape: f32[2,128,128], index: 2, kind: input, shape index: {}]
  %s3 = inlined_call_operand.hbm [shape: f32[128,128], index: 3, kind: input, shape index: {}]
  %s4 = inlined_call_operand.hbm [shape: f32[3,128], index: 4, kind: input, shape index: {}]
  %s5 = inlined_call_operand.vmem [shape: f32[1,128], index: 5, kind: input, shape index: {}]
  %s6 = inlined_call_operand.hbm [shape: f32[14,128], index: 6, kind: input, shape index: {}]
  %s7 = inlined_call_operand.hbm [shape: f32[16,128], index: 7, kind: output, shape index: {}]
  %s8 = sld [smem:[#allocation0]]
  $region85: #{tpu_custom_call.1} parent=0
    _
  %s10 = ssub.s32 1, %s8
  %s11 = scalar_select 0, %s10, %s8
  $region1: #{tpu_custom_call.1} parent=0
    #allocation2 [shape = 'u8[81920]{0}', space=vmem, size = 0x14000, scoped, tag = 'input window, operand 0']
    #allocation3 [shape = 's32[2]{0}', space=sflag, size = 0x8, scoped, tag = 'scoped memory for tpu_custom_call.1']
    #allocation4 [shape = 's32[2]{0}', space=sflag, size = 0x8, scoped, tag = 'scoped memory for tpu_custom_call.1']
    #allocation5 [shape = 'u8[262144]{0}', space=vmem, size = 0x40000, scoped, tag = 'input window, operand 1, single buffered']
    #allocation6 [shape = 's32[1]{0}', space=sflag, size = 0x4, scoped, tag = 'scoped memory for tpu_custom_call.1']
    #allocation7 [shape = 'u8[131072]{0}', space=vmem, size = 0x20000, scoped, tag = 'input window, operand 2, single buffered']
    #allocation8 [shape = 'u8[65536]{0}', space=vmem, size = 0x10000, scoped, tag = 'input window, operand 3, single buffered']
    #allocation9 [shape = 's32[1]{0}', space=sflag, size = 0x4, scoped, tag = 'scoped memory for tpu_custom_call.1']
    #allocation10 [shape = 'u8[2048]{0}', space=vmem, size = 0x800, scoped, tag = 'input window, operand 4, single buffered']
    #allocation11 [shape = 'u8[8192]{0}', space=vmem, size = 0x2000, scoped, tag = 'input window, operand 6, single buffered']
    #allocation12 [shape = 's32[1]{0}', space=sflag, size = 0x4, scoped, tag = 'scoped memory for tpu_custom_call.1']
    #allocation13 [shape = 'u8[8192]{0}', space=vmem, size = 0x2000, scoped, tag = 'output window, operand 0']
    %12 = vsyncpa [#allocation3], 0
    %s13 = scalar_lea.sflag [#allocation3], 1
    %14 = vsyncpa %s13, 0
    %15 = vsyncpa [#allocation6], 0
    %16 = vsyncpa [#allocation9], 0
    %17 = vsyncpa [#allocation12], 0
    %18 = vsyncpa [#allocation4], 0
    %s19 = scalar_lea.sflag [#allocation4], 1
    %20 = vsyncpa %s19, 0
    loop: start=0, step=1, limit=4
    $region2: #{tpu_custom_call.1} parent=1 // loop_pre_header
      _
    $region3: #{tpu_custom_call.1} parent=1 // loop_header
      %s22 = sphi 0, %s26
      %p23 = scmp.ge.s32.totalorder %s22, 4
      %s32 = sphi 0, %s34
      %s35 = sphi 0, %s32
      %s36 = sphi 0, %s35
      %s52 = sphi 0, %s36
      %s56 = sphi 0, %s56
      %s58 = sphi 0, %s56
      %s59 = sphi 0, %s58
      %s73 = sphi 0, %s59
      %s77 = sphi 0, %s77
      %s79 = sphi 0, %s77
      %s80 = sphi 0, %s79
      %s94 = sphi 0, %s80
      %s98 = sphi 0, %s98
      %s100 = sphi 0, %s98
      %s101 = sphi 0, %s100
      %s115 = sphi 0, %s101
      %s119 = sphi 0, %s119
      %s121 = sphi 0, %s119
      %s122 = sphi 0, %s121
      %s136 = sphi 0, %s122
      %s140 = sphi 0, %s140
      %s142 = sphi 0, %s140
      %s143 = sphi 0, %s142
      %s157 = sphi 0, %s143
      %s161 = sphi 0, %s161
      %s163 = sphi 0, %s161
      %s164 = sphi 0, %s163
      %s178 = sphi 0, %s164
      %s184 = sphi 0, %s186
      %s187 = sphi 0, %s184
      %s188 = sphi 0, %s187
      %s204 = sphi 0, %s188
    $region4: #{tpu_custom_call.1} parent=1 // loop_header_branch
      %25 = sbr.rel (%p23) target = $region8
    $region5: #{tpu_custom_call.1} parent=1 // loop_body
      %s27 = ssub.s32 %s22, 1
      %s28 = ssub.s32 %s22, 2
      %s29 = sadd.s32 %s22, 1
      %s30 = ssub.s32 %s22, %s29
      %p31 = scmp.eq.s32.totalorder %s30, 0
      %s33 = sadd.s32 %s32, 1
      %s34 = scalar_select %p31, %s32, %s33
      %p37 = pneg %p31
      %p38 = scmp.eq.s32.totalorder %s22, 1
      %p39 = por %p37, %p38
      %p40 = scmp.ne.s32.totalorder %s32, %s35
      %p41 = scmp.eq.s32.totalorder %s22, 0
      %p42 = por %p40, %p41
      %p43 = scmp.ne.s32.totalorder %s32, %s35
      %p44 = scmp.eq.s32.totalorder %s27, 1
      %p45 = por %p43, %p44
      %p46 = scmp.ne.s32.totalorder %s35, %s36
      %p47 = scmp.eq.s32.totalorder %s27, 0
      %p48 = por %p46, %p47
      %p49 = scmp.ne.s32.totalorder %s35, %s36
      %p50 = scmp.eq.s32.totalorder %s28, 1
      %p51 = por %p49, %p50
      %p53 = scmp.ne.s32.totalorder %s36, %s52
      %p54 = scmp.eq.s32.totalorder %s28, 0
      %p55 = por %p53, %p54
      %s57 = sadd.s32 %s56, 1
      %p60 = scmp.eq.s32.totalorder %s22, 1
      %p61 = scmp.ne.s32.totalorder %s56, %s58
      %p62 = scmp.eq.s32.totalorder %s22, 0
      %p63 = por %p61, %p62
      %p64 = scmp.ne.s32.totalorder %s56, %s58
      %p65 = scmp.eq.s32.totalorder %s27, 1
      %p66 = por %p64, %p65
      %p67 = scmp.ne.s32.totalorder %s58, %s59
      %p68 = scmp.eq.s32.totalorder %s27, 0
      %p69 = por %p67, %p68
      %p70 = scmp.ne.s32.totalorder %s58, %s59
      %p71 = scmp.eq.s32.totalorder %s28, 1
      %p72 = por %p70, %p71
      %p74 = scmp.ne.s32.totalorder %s59, %s73
      %p75 = scmp.eq.s32.totalorder %s28, 0
      %p76 = por %p74, %p75
      %s78 = sadd.s32 %s77, 1
      %p81 = scmp.eq.s32.totalorder %s22, 1
      %p82 = scmp.ne.s32.totalorder %s77, %s79
      %p83 = scmp.eq.s32.totalorder %s22, 0
      %p84 = por %p82, %p83
      %p85 = scmp.ne.s32.totalorder %s77, %s79
      %p86 = scmp.eq.s32.totalorder %s27, 1
      %p87 = por %p85, %p86
      %p88 = scmp.ne.s32.totalorder %s79, %s80
      %p89 = scmp.eq.s32.totalorder %s27, 0
      %p90 = por %p88, %p89
      %p91 = scmp.ne.s32.totalorder %s79, %s80
      %p92 = scmp.eq.s32.totalorder %s28, 1
      %p93 = por %p91, %p92
      %p95 = scmp.ne.s32.totalorder %s80, %s94
      %p96 = scmp.eq.s32.totalorder %s28, 0
      %p97 = por %p95, %p96
      %s99 = sadd.s32 %s98, 1
      %p102 = scmp.eq.s32.totalorder %s22, 1
      %p103 = scmp.ne.s32.totalorder %s98, %s100
      %p104 = scmp.eq.s32.totalorder %s22, 0
      %p105 = por %p103, %p104
      %p106 = scmp.ne.s32.totalorder %s98, %s100
      %p107 = scmp.eq.s32.totalorder %s27, 1
      %p108 = por %p106, %p107
      %p109 = scmp.ne.s32.totalorder %s100, %s101
      %p110 = scmp.eq.s32.totalorder %s27, 0
      %p111 = por %p109, %p110
      %p112 = scmp.ne.s32.totalorder %s100, %s101
      %p113 = scmp.eq.s32.totalorder %s28, 1
      %p114 = por %p112, %p113
      %p116 = scmp.ne.s32.totalorder %s101, %s115
      %p117 = scmp.eq.s32.totalorder %s28, 0
      %p118 = por %p116, %p117
      %s120 = sadd.s32 %s119, 1
      %p123 = scmp.eq.s32.totalorder %s22, 1
      %p124 = scmp.ne.s32.totalorder %s119, %s121
      %p125 = scmp.eq.s32.totalorder %s22, 0
      %p126 = por %p124, %p125
      %p127 = scmp.ne.s32.totalorder %s119, %s121
      %p128 = scmp.eq.s32.totalorder %s27, 1
      %p129 = por %p127, %p128
      %p130 = scmp.ne.s32.totalorder %s121, %s122
      %p131 = scmp.eq.s32.totalorder %s27, 0
      %p132 = por %p130, %p131
      %p133 = scmp.ne.s32.totalorder %s121, %s122
      %p134 = scmp.eq.s32.totalorder %s28, 1
      %p135 = por %p133, %p134
      %p137 = scmp.ne.s32.totalorder %s122, %s136
      %p138 = scmp.eq.s32.totalorder %s28, 0
      %p139 = por %p137, %p138
      %s141 = sadd.s32 %s140, 1
      %p144 = scmp.eq.s32.totalorder %s22, 1
      %p145 = scmp.ne.s32.totalorder %s140, %s142
      %p146 = scmp.eq.s32.totalorder %s22, 0
      %p147 = por %p145, %p146
      %p148 = scmp.ne.s32.totalorder %s140, %s142
      %p149 = scmp.eq.s32.totalorder %s27, 1
      %p150 = por %p148, %p149
      %p151 = scmp.ne.s32.totalorder %s142, %s143
      %p152 = scmp.eq.s32.totalorder %s27, 0
      %p153 = por %p151, %p152
      %p154 = scmp.ne.s32.totalorder %s142, %s143
      %p155 = scmp.eq.s32.totalorder %s28, 1
      %p156 = por %p154, %p155
      %p158 = scmp.ne.s32.totalorder %s143, %s157
      %p159 = scmp.eq.s32.totalorder %s28, 0
      %p160 = por %p158, %p159
      %s162 = sadd.s32 %s161, 1
      %p165 = scmp.eq.s32.totalorder %s22, 1
      %p166 = scmp.ne.s32.totalorder %s161, %s163
      %p167 = scmp.eq.s32.totalorder %s22, 0
      %p168 = por %p166, %p167
      %p169 = scmp.ne.s32.totalorder %s161, %s163
      %p170 = scmp.eq.s32.totalorder %s27, 1
      %p171 = por %p169, %p170
      %p172 = scmp.ne.s32.totalorder %s163, %s164
      %p173 = scmp.eq.s32.totalorder %s27, 0
      %p174 = por %p172, %p173
      %p175 = scmp.ne.s32.totalorder %s163, %s164
      %p176 = scmp.eq.s32.totalorder %s28, 1
      %p177 = por %p175, %p176
      %p179 = scmp.ne.s32.totalorder %s164, %s178
      %p180 = scmp.eq.s32.totalorder %s28, 0
      %p181 = por %p179, %p180
      %s182 = ssub.s32 %s22, %s29
      %p183 = scmp.eq.s32.totalorder %s182, 0
      %s185 = sadd.s32 %s184, 1
      %s186 = scalar_select %p183, %s184, %s185
      %p189 = pneg %p183
      %p190 = scmp.eq.s32.totalorder %s22, 1
      %p191 = por %p189, %p190
      %p192 = scmp.ne.s32.totalorder %s184, %s187
      %p193 = scmp.eq.s32.totalorder %s22, 0
      %p194 = por %p192, %p193
      %p195 = scmp.ne.s32.totalorder %s184, %s187
      %p196 = scmp.eq.s32.totalorder %s27, 1
      %p197 = por %p195, %p196
      %p198 = scmp.ne.s32.totalorder %s187, %s188
      %p199 = scmp.eq.s32.totalorder %s27, 0
      %p200 = por %p198, %p199
      %p201 = scmp.ne.s32.totalorder %s187, %s188
      %p202 = scmp.eq.s32.totalorder %s28, 1
      %p203 = por %p201, %p202
      %p205 = scmp.ne.s32.totalorder %s188, %s204
      %p206 = scmp.eq.s32.totalorder %s28, 0
      %p207 = por %p205, %p206
      %p208 = scmp.le.s32.totalorder 1, %s22
      %p209 = scmp.lt.s32.totalorder %s22, 3
      %p210 = pnand %p208, %p209
      %p211 = pneg %p210
      // Predicated region
      $region9: #{tpu_custom_call.1} parent=5 // pred_check
        _
      $region10: #{tpu_custom_call.1} parent=5 // pred_check_branch
        %213 = sbr.rel (%p210) target = $region12
      $region11: #{tpu_custom_call.1} parent=5 // pred_region
        %s214 = ssub.s32 %s22, 1
        // Predicated region
        $region13: #{tpu_custom_call.1} parent=11 // pred_check
          %p215 = pneg %p69
        $region14: #{tpu_custom_call.1} parent=11 // pred_check_branch
          %217 = sbr.rel (%p215) target = $region16
        $region15: #{tpu_custom_call.1} parent=11 // pred_region
          %219 = vsyncadd [#allocation6], 0
          %s220 = sshll.u32 %s1, 4
          %s221 = int_to_ptr.hbm [resolvable:$true] %s220
          %s222 = sshll.u32 [#allocation5], 4
          %s223 = int_to_ptr.vmem [resolvable:$true] %s222
          %228 = dma.hbm_to_vmem [thread:$0]  %s221, 8192, %s223, [#allocation6], 128, 128, 8
        $region16: #{tpu_custom_call.1} parent=11 // pred_fallthru
          _
        // Predicated region
        $region17: #{tpu_custom_call.1} parent=11 // pred_check
          %p229 = pneg %p90
        $region18: #{tpu_custom_call.1} parent=11 // pred_check_branch
          %231 = sbr.rel (%p229) target = $region20
        $region19: #{tpu_custom_call.1} parent=11 // pred_region
          %233 = vsyncadd [#allocation6], 0
          %s234 = sshll.u32 %s2, 4
          %s235 = int_to_ptr.hbm [resolvable:$true] %s234
          %s236 = sshll.u32 [#allocation7], 4
          %s237 = int_to_ptr.vmem [resolvable:$true] %s236
          %242 = dma.hbm_to_vmem [thread:$0]  %s235, 4096, %s237, [#allocation6], 128, 128, 8
        $region20: #{tpu_custom_call.1} parent=11 // pred_fallthru
          _
        // Predicated region
        $region21: #{tpu_custom_call.1} parent=11 // pred_check
          %p243 = pneg %p111
        $region22: #{tpu_custom_call.1} parent=11 // pred_check_branch
          %245 = sbr.rel (%p243) target = $region24
        $region23: #{tpu_custom_call.1} parent=11 // pred_region
          %247 = vsyncadd [#allocation9], 0
          %s248 = sshll.u32 %s3, 4
          %s249 = int_to_ptr.hbm [resolvable:$true] %s248
          %s250 = sshll.u32 [#allocation8], 4
          %s251 = int_to_ptr.vmem [resolvable:$true] %s250
          %256 = dma.hbm_to_vmem [thread:$0]  %s249, 2048, %s251, [#allocation9], 128, 128, 8
        $region24: #{tpu_custom_call.1} parent=11 // pred_fallthru
          _
        // Predicated region
        $region25: #{tpu_custom_call.1} parent=11 // pred_check
          %p257 = pneg %p132
        $region26: #{tpu_custom_call.1} parent=11 // pred_check_branch
          %259 = sbr.rel (%p257) target = $region28
        $region27: #{tpu_custom_call.1} parent=11 // pred_region
          %261 = vsyncadd [#allocation9], 0
          %s263 = sshll.u32 %s4, 4
          %s264 = int_to_ptr.hbm [resolvable:$true] %s263
          %s265 = sshll.u32 [#allocation10], 4
          %s266 = int_to_ptr.vmem [resolvable:$true] %s265
          %268 = dma.hbm_to_vmem [thread:$0]  %s264, 64, %s266, [#allocation9]
        $region28: #{tpu_custom_call.1} parent=11 // pred_fallthru
          _
        // Predicated region
        $region29: #{tpu_custom_call.1} parent=11 // pred_check
          %p269 = pneg %p153
        $region30: #{tpu_custom_call.1} parent=11 // pred_check_branch
          %271 = sbr.rel (%p269) target = $region32
        $region31: #{tpu_custom_call.1} parent=11 // pred_region
          _
        $region32: #{tpu_custom_call.1} parent=11 // pred_fallthru
          _
        // Predicated region
        $region33: #{tpu_custom_call.1} parent=11 // pred_check
          %p272 = pneg %p174
        $region34: #{tpu_custom_call.1} parent=11 // pred_check_branch
          %274 = sbr.rel (%p272) target = $region36
        $region35: #{tpu_custom_call.1} parent=11 // pred_region
          %276 = vsyncadd [#allocation12], 0
          %s277 = sshll.u32 %s6, 4
          %s278 = int_to_ptr.hbm [resolvable:$true] %s277
          %s279 = sshll.u32 [#allocation11], 4
          %s280 = int_to_ptr.vmem [resolvable:$true] %s279
          %285 = dma.hbm_to_vmem [thread:$0]  %s278, 256, %s280, [#allocation12], 128, 128, 8
        $region36: #{tpu_custom_call.1} parent=11 // pred_fallthru
          _
      $region12: #{tpu_custom_call.1} parent=5 // pred_fallthru
        _
      %p286 = scmp.lt.s32.totalorder %s22, 2
      // Predicated region
      $region37: #{tpu_custom_call.1} parent=5 // pred_check
        %p287 = pneg %p286
      $region38: #{tpu_custom_call.1} parent=5 // pred_check_branch
        %289 = sbr.rel (%p287) target = $region40
      $region39: #{tpu_custom_call.1} parent=5 // pred_region
        // Predicated region
        $region41: #{tpu_custom_call.1} parent=39 // pred_check
          %p290 = pneg %p42
        $region42: #{tpu_custom_call.1} parent=39 // pred_check_branch
          %292 = sbr.rel (%p290) target = $region44
        $region43: #{tpu_custom_call.1} parent=39 // pred_region
          %s293 = sand.u32 %s32, 1
          %s294 = scalar_lea.sflag [#allocation3], %s293
          %s295 = sand.u32 %s32, 1
          %s296 = smul.addr %s295, 80
          %s297 = scalar_lea.vmem [#allocation2], %s296
          %299 = vsyncadd %s294, 0
          %s300 = smul.addr %s22, 8
          %s301 = scalar_lea.hbm %s0, %s300
          %s302 = sshll.u32 %s301, 4
          %s303 = int_to_ptr.hbm [resolvable:$true] %s302
          %s304 = sshll.u32 %s297, 4
          %s305 = int_to_ptr.vmem [resolvable:$true] %s304
          %310 = dma.hbm_to_vmem [thread:$0]  %s303, 1280, %s305, %s294, 256, 128, 8
        $region44: #{tpu_custom_call.1} parent=39 // pred_fallthru
          _
      $region40: #{tpu_custom_call.1} parent=5 // pred_fallthru
        _
      %p311 = scmp.le.s32.totalorder 1, %s22
      %p312 = scmp.lt.s32.totalorder %s22, 3
      %p313 = pnand %p311, %p312
      %p314 = pneg %p313
      // Predicated region
      $region45: #{tpu_custom_call.1} parent=5 // pred_check
        _
      $region46: #{tpu_custom_call.1} parent=5 // pred_check_branch
        %316 = sbr.rel (%p313) target = $region48
      $region47: #{tpu_custom_call.1} parent=5 // pred_region
        %s317 = ssub.s32 %s22, 1
        %s318 = sand.u32 %s35, 1
        %s319 = scalar_lea.sflag [#allocation3], %s318
        %s320 = sand.u32 %s35, 1
        %s321 = smul.addr %s320, 80
        %s322 = scalar_lea.vmem [#allocation2], %s321
        // Predicated region
        $region49: #{tpu_custom_call.1} parent=47 // pred_check
          %p323 = pneg %p48
        $region50: #{tpu_custom_call.1} parent=47 // pred_check_branch
          %325 = sbr.rel (%p323) target = $region52
        $region51: #{tpu_custom_call.1} parent=47 // pred_region
          %327 = dma.done %s319, 1280
        $region52: #{tpu_custom_call.1} parent=47 // pred_fallthru
          _
        // Predicated region
        $region53: #{tpu_custom_call.1} parent=47 // pred_check
          %p328 = pneg %p69
        $region54: #{tpu_custom_call.1} parent=47 // pred_check_branch
          %330 = sbr.rel (%p328) target = $region56
        $region55: #{tpu_custom_call.1} parent=47 // pred_region
          %332 = dma.done [#allocation6], 8192
        $region56: #{tpu_custom_call.1} parent=47 // pred_fallthru
          _
        // Predicated region
        $region57: #{tpu_custom_call.1} parent=47 // pred_check
          %p333 = pneg %p90
        $region58: #{tpu_custom_call.1} parent=47 // pred_check_branch
          %335 = sbr.rel (%p333) target = $region60
        $region59: #{tpu_custom_call.1} parent=47 // pred_region
          %337 = dma.done [#allocation6], 4096
        $region60: #{tpu_custom_call.1} parent=47 // pred_fallthru
          _
        // Predicated region
        $region61: #{tpu_custom_call.1} parent=47 // pred_check
          %p338 = pneg %p111
        $region62: #{tpu_custom_call.1} parent=47 // pred_check_branch
          %340 = sbr.rel (%p338) target = $region64
        $region63: #{tpu_custom_call.1} parent=47 // pred_region
          %342 = dma.done [#allocation9], 2048
        $region64: #{tpu_custom_call.1} parent=47 // pred_fallthru
          _
        // Predicated region
        $region65: #{tpu_custom_call.1} parent=47 // pred_check
          %p343 = pneg %p132
        $region66: #{tpu_custom_call.1} parent=47 // pred_check_branch
          %345 = sbr.rel (%p343) target = $region68
        $region67: #{tpu_custom_call.1} parent=47 // pred_region
          %347 = dma.done [#allocation9], 64
        $region68: #{tpu_custom_call.1} parent=47 // pred_fallthru
          _
        // Predicated region
        $region69: #{tpu_custom_call.1} parent=47 // pred_check
          %p348 = pneg %p174
        $region70: #{tpu_custom_call.1} parent=47 // pred_check_branch
          %350 = sbr.rel (%p348) target = $region72
        $region71: #{tpu_custom_call.1} parent=47 // pred_region
          %352 = dma.done [#allocation12], 256
        $region72: #{tpu_custom_call.1} parent=47 // pred_fallthru
          _
        %s353 = sand.u32 %s35, 1
        %s354 = scalar_lea.sflag [#allocation3], %s353
        %s355 = sand.u32 %s35, 1
        %s356 = smul.addr %s355, 80
        %s357 = scalar_lea.vmem [#allocation2], %s356
        %p358 = pneg %p48
        %p359 = pneg %p45
        %p360 = pneg %p69
        %p361 = pneg %p66
        %p362 = pneg %p90
        %p363 = pneg %p87
        %p364 = pneg %p111
        %p365 = pneg %p108
        %p366 = pneg %p132
        %p367 = pneg %p129
        %p368 = pneg %p153
        %p369 = pneg %p150
        %p370 = pneg %p174
        %p371 = pneg %p171
        %p372 = pneg %p200
        %p373 = pneg %p197
        %s374 = sand.u32 %s187, 1
        %s375 = scalar_lea.sflag [#allocation4], %s374
        %s376 = sand.u32 %s187, 1
        %s377 = smul.addr %s376, 8
        %s378 = scalar_lea.vmem [#allocation13], %s377
        %v379 = vld [vmem:[#allocation5] sm:$0xff]
        %v380 = vld [vmem:[#allocation5 + $0x8] sm:$0xff]
        %v381 = vld [vmem:[#allocation5 + $0x10] sm:$0xff]
        %v382 = vld [vmem:[#allocation5 + $0x18] sm:$0xff]
        %v383 = vld [vmem:[#allocation5 + $0x20] sm:$0xff]
        %v384 = vld [vmem:[#allocation5 + $0x28] sm:$0xff]
        %v385 = vld [vmem:[#allocation5 + $0x30] sm:$0xff]
        %v386 = vld [vmem:[#allocation5 + $0x38] sm:$0xff]
        %v387 = vld [vmem:[#allocation5 + $0x40] sm:$0xff]
        %v388 = vld [vmem:[#allocation5 + $0x48] sm:$0xff]
        %v389 = vld [vmem:[#allocation5 + $0x50] sm:$0xff]
        %v390 = vld [vmem:[#allocation5 + $0x58] sm:$0xff]
        %v391 = vld [vmem:[#allocation5 + $0x60] sm:$0xff]
        %v392 = vld [vmem:[#allocation5 + $0x68] sm:$0xff]
        %v393 = vld [vmem:[#allocation5 + $0x70] sm:$0xff]
        %v394 = vld [vmem:[#allocation5 + $0x78] sm:$0xff]
        %v395 = vld [vmem:[#allocation5 + $0x80] sm:$0xff]
        %v396 = vld [vmem:[#allocation5 + $0x88] sm:$0xff]
        %v397 = vld [vmem:[#allocation5 + $0x90] sm:$0xff]
        %v398 = vld [vmem:[#allocation5 + $0x98] sm:$0xff]
        %v399 = vld [vmem:[#allocation5 + $0xa0] sm:$0xff]
        %v400 = vld [vmem:[#allocation5 + $0xa8] sm:$0xff]
        %v401 = vld [vmem:[#allocation5 + $0xb0] sm:$0xff]
        %v402 = vld [vmem:[#allocation5 + $0xb8] sm:$0xff]
        %v403 = vld [vmem:[#allocation5 + $0xc0] sm:$0xff]
        %v404 = vld [vmem:[#allocation5 + $0xc8] sm:$0xff]
        %v405 = vld [vmem:[#allocation5 + $0xd0] sm:$0xff]
        %v406 = vld [vmem:[#allocation5 + $0xd8] sm:$0xff]
        %v407 = vld [vmem:[#allocation5 + $0xe0] sm:$0xff]
        %v408 = vld [vmem:[#allocation5 + $0xe8] sm:$0xff]
        %v409 = vld [vmem:[#allocation5 + $0xf0] sm:$0xff]
        %v410 = vld [vmem:[#allocation5 + $0xf8] sm:$0xff]
        %v411 = vld [vmem:[#allocation5 + $0x100] sm:$0xff]
        %v412 = vld [vmem:[#allocation5 + $0x108] sm:$0xff]
        %v413 = vld [vmem:[#allocation5 + $0x110] sm:$0xff]
        %v414 = vld [vmem:[#allocation5 + $0x118] sm:$0xff]
        %v415 = vld [vmem:[#allocation5 + $0x120] sm:$0xff]
        %v416 = vld [vmem:[#allocation5 + $0x128] sm:$0xff]
        %v417 = vld [vmem:[#allocation5 + $0x130] sm:$0xff]
        %v418 = vld [vmem:[#allocation5 + $0x138] sm:$0xff]
        %v419 = vld [vmem:[#allocation5 + $0x140] sm:$0xff]
        %v420 = vld [vmem:[#allocation5 + $0x148] sm:$0xff]
        %v421 = vld [vmem:[#allocation5 + $0x150] sm:$0xff]
        %v422 = vld [vmem:[#allocation5 + $0x158] sm:$0xff]
        %v423 = vld [vmem:[#allocation5 + $0x160] sm:$0xff]
        %v424 = vld [vmem:[#allocation5 + $0x168] sm:$0xff]
        %v425 = vld [vmem:[#allocation5 + $0x170] sm:$0xff]
        %v426 = vld [vmem:[#allocation5 + $0x178] sm:$0xff]
        %v427 = vld [vmem:[#allocation5 + $0x180] sm:$0xff]
        %v428 = vld [vmem:[#allocation5 + $0x188] sm:$0xff]
        %v429 = vld [vmem:[#allocation5 + $0x190] sm:$0xff]
        %v430 = vld [vmem:[#allocation5 + $0x198] sm:$0xff]
        %v431 = vld [vmem:[#allocation5 + $0x1a0] sm:$0xff]
        %v432 = vld [vmem:[#allocation5 + $0x1a8] sm:$0xff]
        %v433 = vld [vmem:[#allocation5 + $0x1b0] sm:$0xff]
        %v434 = vld [vmem:[#allocation5 + $0x1b8] sm:$0xff]
        %v435 = vld [vmem:[#allocation5 + $0x1c0] sm:$0xff]
        %v436 = vld [vmem:[#allocation5 + $0x1c8] sm:$0xff]
        %v437 = vld [vmem:[#allocation5 + $0x1d0] sm:$0xff]
        %v438 = vld [vmem:[#allocation5 + $0x1d8] sm:$0xff]
        %v439 = vld [vmem:[#allocation5 + $0x1e0] sm:$0xff]
        %v440 = vld [vmem:[#allocation5 + $0x1e8] sm:$0xff]
        %v441 = vld [vmem:[#allocation5 + $0x1f0] sm:$0xff]
        %v442 = vld [vmem:[#allocation5 + $0x1f8] sm:$0xff]
        %v443 = vld [vmem:[%s322] sm:$0xff]
        %s444 = scalar_lea.vmem %s322, 8 [#allocation2]
        %v445 = vld [vmem:[%s444] sm:$0xff]
        %s446 = scalar_lea.vmem %s322, 16 [#allocation2]
        %v447 = vld [vmem:[%s446] sm:$0xff]
        %s448 = scalar_lea.vmem %s322, 24 [#allocation2]
        %v449 = vld [vmem:[%s448] sm:$0xff]
        %v450 = vld [vmem:[#allocation11] sm:$0x1]
        %v451 = vperm.slane %v450, 0
        %452 = vmatpush.msra.mxu0 %v394
        %453 = vmatpush.msra.mxu0 %v393
        %454 = vmatpush.msra.mxu0 %v392
        %455 = vmatpush.msra.mxu0 %v391
        %456 = vmatpush.msra.mxu0 %v390
        %457 = vmatpush.msra.mxu0 %v389
        %458 = vmatpush.msra.mxu0 %v388
        %459 = vmatpush.msra.mxu0 %v387
        %460 = vmatpush.msra.mxu0 %v386
        %461 = vmatpush.msra.mxu0 %v385
        %462 = vmatpush.msra.mxu0 %v384
        %463 = vmatpush.msra.mxu0 %v383
        %464 = vmatpush.msra.mxu0 %v382
        %465 = vmatpush.msra.mxu0 %v381
        %466 = vmatpush.msra.mxu0 %v380
        %467 = vmatpush.msra.mxu0 %v379
        %468 = vmatmul.f32.gmra.mxu0 %v443
        %v469 = vpop.f32.mrf.mxu0
        %v470 = vadd.f32 %v451, %v469
        %471 = vdwg.mxu0
        %472 = vmatpush.msra.mxu0 %v410
        %473 = vmatpush.msra.mxu0 %v409
        %474 = vmatpush.msra.mxu0 %v408
        %475 = vmatpush.msra.mxu0 %v407
        %476 = vmatpush.msra.mxu0 %v406
        %477 = vmatpush.msra.mxu0 %v405
        %478 = vmatpush.msra.mxu0 %v404
        %479 = vmatpush.msra.mxu0 %v403
        %480 = vmatpush.msra.mxu0 %v402
        %481 = vmatpush.msra.mxu0 %v401
        %482 = vmatpush.msra.mxu0 %v400
        %483 = vmatpush.msra.mxu0 %v399
        %484 = vmatpush.msra.mxu0 %v398
        %485 = vmatpush.msra.mxu0 %v397
        %486 = vmatpush.msra.mxu0 %v396
        %487 = vmatpush.msra.mxu0 %v395
        %488 = vmatmul.f32.gmra.mxu0 %v445
        %v489 = vpop.f32.mrf.mxu0
        %v490 = vadd.f32 %v470, %v489
        %491 = vdwg.mxu0
        %492 = vmatpush.msra.mxu0 %v426
        %493 = vmatpush.msra.mxu0 %v425
        %494 = vmatpush.msra.mxu0 %v424
        %495 = vmatpush.msra.mxu0 %v423
        %496 = vmatpush.msra.mxu0 %v422
        %497 = vmatpush.msra.mxu0 %v421
        %498 = vmatpush.msra.mxu0 %v420
        %499 = vmatpush.msra.mxu0 %v419
        %500 = vmatpush.msra.mxu0 %v418
        %501 = vmatpush.msra.mxu0 %v417
        %502 = vmatpush.msra.mxu0 %v416
        %503 = vmatpush.msra.mxu0 %v415
        %504 = vmatpush.msra.mxu0 %v414
        %505 = vmatpush.msra.mxu0 %v413
        %506 = vmatpush.msra.mxu0 %v412
        %507 = vmatpush.msra.mxu0 %v411
        %508 = vmatmul.f32.gmra.mxu0 %v447
        %v509 = vpop.f32.mrf.mxu0
        %v510 = vadd.f32 %v490, %v509
        %511 = vdwg.mxu0
        %512 = vmatpush.msra.mxu0 %v442
        %513 = vmatpush.msra.mxu0 %v441
        %514 = vmatpush.msra.mxu0 %v440
        %515 = vmatpush.msra.mxu0 %v439
        %516 = vmatpush.msra.mxu0 %v438
        %517 = vmatpush.msra.mxu0 %v437
        %518 = vmatpush.msra.mxu0 %v436
        %519 = vmatpush.msra.mxu0 %v435
        %520 = vmatpush.msra.mxu0 %v434
        %521 = vmatpush.msra.mxu0 %v433
        %522 = vmatpush.msra.mxu0 %v432
        %523 = vmatpush.msra.mxu0 %v431
        %524 = vmatpush.msra.mxu0 %v430
        %525 = vmatpush.msra.mxu0 %v429
        %526 = vmatpush.msra.mxu0 %v428
        %527 = vmatpush.msra.mxu0 %v427
        %528 = vmatmul.f32.gmra.mxu0 %v449
        %v529 = vpop.f32.mrf.mxu0
        %v530 = vadd.f32 %v510, %v529
        %531 = vdwg.mxu0
        %s532 = scalar_lea.vmem %s322, 32 [#allocation2]
        %v533 = vld [vmem:[%s532] sm:$0xff]
        %v534 = vld [vmem:[#allocation11 + $0x1] sm:$0x1]
        %v535 = vperm.slane %v534, 0
        %536 = vmatpush.msra.mxu0 %v394
        %537 = vmatpush.msra.mxu0 %v393
        %538 = vmatpush.msra.mxu0 %v392
        %539 = vmatpush.msra.mxu0 %v391
        %540 = vmatpush.msra.mxu0 %v390
        %541 = vmatpush.msra.mxu0 %v389
        %542 = vmatpush.msra.mxu0 %v388
        %543 = vmatpush.msra.mxu0 %v387
        %544 = vmatpush.msra.mxu0 %v386
        %545 = vmatpush.msra.mxu0 %v385
        %546 = vmatpush.msra.mxu0 %v384
        %547 = vmatpush.msra.mxu0 %v383
        %548 = vmatpush.msra.mxu0 %v382
        %549 = vmatpush.msra.mxu0 %v381
        %550 = vmatpush.msra.mxu0 %v380
        %551 = vmatpush.msra.mxu0 %v379
        %552 = vmatmul.f32.gmra.mxu0 %v445
        %v553 = vpop.f32.mrf.mxu0
        %v554 = vadd.f32 %v535, %v553
        %555 = vdwg.mxu0
        %556 = vmatpush.msra.mxu0 %v410
        %557 = vmatpush.msra.mxu0 %v409
        %558 = vmatpush.msra.mxu0 %v408
        %559 = vmatpush.msra.mxu0 %v407
        %560 = vmatpush.msra.mxu0 %v406
        %561 = vmatpush.msra.mxu0 %v405
        %562 = vmatpush.msra.mxu0 %v404
        %563 = vmatpush.msra.mxu0 %v403
        %564 = vmatpush.msra.mxu0 %v402
        %565 = vmatpush.msra.mxu0 %v401
        %566 = vmatpush.msra.mxu0 %v400
        %567 = vmatpush.msra.mxu0 %v399
        %568 = vmatpush.msra.mxu0 %v398
        %569 = vmatpush.msra.mxu0 %v397
        %570 = vmatpush.msra.mxu0 %v396
        %571 = vmatpush.msra.mxu0 %v395
        %572 = vmatmul.f32.gmra.mxu0 %v447
        %v573 = vpop.f32.mrf.mxu0
        %v574 = vadd.f32 %v554, %v573
        %575 = vdwg.mxu0
        %576 = vmatpush.msra.mxu0 %v426
        %577 = vmatpush.msra.mxu0 %v425
        %578 = vmatpush.msra.mxu0 %v424
        %579 = vmatpush.msra.mxu0 %v423
        %580 = vmatpush.msra.mxu0 %v422
        %581 = vmatpush.msra.mxu0 %v421
        %582 = vmatpush.msra.mxu0 %v420
        %583 = vmatpush.msra.mxu0 %v419
        %584 = vmatpush.msra.mxu0 %v418
        %585 = vmatpush.msra.mxu0 %v417
        %586 = vmatpush.msra.mxu0 %v416
        %587 = vmatpush.msra.mxu0 %v415
        %588 = vmatpush.msra.mxu0 %v414
        %589 = vmatpush.msra.mxu0 %v413
        %590 = vmatpush.msra.mxu0 %v412
        %591 = vmatpush.msra.mxu0 %v411
        %592 = vmatmul.f32.gmra.mxu0 %v449
        %v593 = vpop.f32.mrf.mxu0
        %v594 = vadd.f32 %v574, %v593
        %595 = vdwg.mxu0
        %596 = vmatpush.msra.mxu0 %v442
        %597 = vmatpush.msra.mxu0 %v441
        %598 = vmatpush.msra.mxu0 %v440
        %599 = vmatpush.msra.mxu0 %v439
        %600 = vmatpush.msra.mxu0 %v438
        %601 = vmatpush.msra.mxu0 %v437
        %602 = vmatpush.msra.mxu0 %v436
        %603 = vmatpush.msra.mxu0 %v435
        %604 = vmatpush.msra.mxu0 %v434
        %605 = vmatpush.msra.mxu0 %v433
        %606 = vmatpush.msra.mxu0 %v432
        %607 = vmatpush.msra.mxu0 %v431
        %608 = vmatpush.msra.mxu0 %v430
        %609 = vmatpush.msra.mxu0 %v429
        %610 = vmatpush.msra.mxu0 %v428
        %611 = vmatpush.msra.mxu0 %v427
        %612 = vmatmul.f32.gmra.mxu0 %v533
        %v613 = vpop.f32.mrf.mxu0
        %v614 = vadd.f32 %v594, %v613
        %615 = vdwg.mxu0
        %v616 = vmax.f32 %v530, %v614
        %s617 = scalar_lea.vmem %s322, 40 [#allocation2]
        %v618 = vld [vmem:[%s617] sm:$0xff]
        %v619 = vld [vmem:[#allocation11 + $0x2] sm:$0x1]
        %v620 = vperm.slane %v619, 0
        %621 = vmatpush.msra.mxu0 %v394
        %622 = vmatpush.msra.mxu0 %v393
        %623 = vmatpush.msra.mxu0 %v392
        %624 = vmatpush.msra.mxu0 %v391
        %625 = vmatpush.msra.mxu0 %v390
        %626 = vmatpush.msra.mxu0 %v389
        %627 = vmatpush.msra.mxu0 %v388
        %628 = vmatpush.msra.mxu0 %v387
        %629 = vmatpush.msra.mxu0 %v386
        %630 = vmatpush.msra.mxu0 %v385
        %631 = vmatpush.msra.mxu0 %v384
        %632 = vmatpush.msra.mxu0 %v383
        %633 = vmatpush.msra.mxu0 %v382
        %634 = vmatpush.msra.mxu0 %v381
        %635 = vmatpush.msra.mxu0 %v380
        %636 = vmatpush.msra.mxu0 %v379
        %637 = vmatmul.f32.gmra.mxu0 %v447
        %v638 = vpop.f32.mrf.mxu0
        %v639 = vadd.f32 %v620, %v638
        %640 = vdwg.mxu0
        %641 = vmatpush.msra.mxu0 %v410
        %642 = vmatpush.msra.mxu0 %v409
        %643 = vmatpush.msra.mxu0 %v408
        %644 = vmatpush.msra.mxu0 %v407
        %645 = vmatpush.msra.mxu0 %v406
        %646 = vmatpush.msra.mxu0 %v405
        %647 = vmatpush.msra.mxu0 %v404
        %648 = vmatpush.msra.mxu0 %v403
        %649 = vmatpush.msra.mxu0 %v402
        %650 = vmatpush.msra.mxu0 %v401
        %651 = vmatpush.msra.mxu0 %v400
        %652 = vmatpush.msra.mxu0 %v399
        %653 = vmatpush.msra.mxu0 %v398
        %654 = vmatpush.msra.mxu0 %v397
        %655 = vmatpush.msra.mxu0 %v396
        %656 = vmatpush.msra.mxu0 %v395
        %657 = vmatmul.f32.gmra.mxu0 %v449
        %v658 = vpop.f32.mrf.mxu0
        %v659 = vadd.f32 %v639, %v658
        %660 = vdwg.mxu0
        %661 = vmatpush.msra.mxu0 %v426
        %662 = vmatpush.msra.mxu0 %v425
        %663 = vmatpush.msra.mxu0 %v424
        %664 = vmatpush.msra.mxu0 %v423
        %665 = vmatpush.msra.mxu0 %v422
        %666 = vmatpush.msra.mxu0 %v421
        %667 = vmatpush.msra.mxu0 %v420
        %668 = vmatpush.msra.mxu0 %v419
        %669 = vmatpush.msra.mxu0 %v418
        %670 = vmatpush.msra.mxu0 %v417
        %671 = vmatpush.msra.mxu0 %v416
        %672 = vmatpush.msra.mxu0 %v415
        %673 = vmatpush.msra.mxu0 %v414
        %674 = vmatpush.msra.mxu0 %v413
        %675 = vmatpush.msra.mxu0 %v412
        %676 = vmatpush.msra.mxu0 %v411
        %677 = vmatmul.f32.gmra.mxu0 %v533
        %v678 = vpop.f32.mrf.mxu0
        %v679 = vadd.f32 %v659, %v678
        %680 = vdwg.mxu0
        %681 = vmatpush.msra.mxu0 %v442
        %682 = vmatpush.msra.mxu0 %v441
        %683 = vmatpush.msra.mxu0 %v440
        %684 = vmatpush.msra.mxu0 %v439
        %685 = vmatpush.msra.mxu0 %v438
        %686 = vmatpush.msra.mxu0 %v437
        %687 = vmatpush.msra.mxu0 %v436
        %688 = vmatpush.msra.mxu0 %v435
        %689 = vmatpush.msra.mxu0 %v434
        %690 = vmatpush.msra.mxu0 %v433
        %691 = vmatpush.msra.mxu0 %v432
        %692 = vmatpush.msra.mxu0 %v431
        %693 = vmatpush.msra.mxu0 %v430
        %694 = vmatpush.msra.mxu0 %v429
        %695 = vmatpush.msra.mxu0 %v428
        %696 = vmatpush.msra.mxu0 %v427
        %697 = vmatmul.f32.gmra.mxu0 %v618
        %v698 = vpop.f32.mrf.mxu0
        %v699 = vadd.f32 %v679, %v698
        %700 = vdwg.mxu0
        %v701 = vmax.f32 %v616, %v699
        %s702 = scalar_lea.vmem %s322, 48 [#allocation2]
        %v703 = vld [vmem:[%s702] sm:$0xff]
        %v704 = vld [vmem:[#allocation11 + $0x3] sm:$0x1]
        %v705 = vperm.slane %v704, 0
        %706 = vmatpush.msra.mxu0 %v394
        %707 = vmatpush.msra.mxu0 %v393
        %708 = vmatpush.msra.mxu0 %v392
        %709 = vmatpush.msra.mxu0 %v391
        %710 = vmatpush.msra.mxu0 %v390
        %711 = vmatpush.msra.mxu0 %v389
        %712 = vmatpush.msra.mxu0 %v388
        %713 = vmatpush.msra.mxu0 %v387
        %714 = vmatpush.msra.mxu0 %v386
        %715 = vmatpush.msra.mxu0 %v385
        %716 = vmatpush.msra.mxu0 %v384
        %717 = vmatpush.msra.mxu0 %v383
        %718 = vmatpush.msra.mxu0 %v382
        %719 = vmatpush.msra.mxu0 %v381
        %720 = vmatpush.msra.mxu0 %v380
        %721 = vmatpush.msra.mxu0 %v379
        %722 = vmatmul.f32.gmra.mxu0 %v449
        %v723 = vpop.f32.mrf.mxu0
        %v724 = vadd.f32 %v705, %v723
        %725 = vdwg.mxu0
        %726 = vmatpush.msra.mxu0 %v410
        %727 = vmatpush.msra.mxu0 %v409
        %728 = vmatpush.msra.mxu0 %v408
        %729 = vmatpush.msra.mxu0 %v407
        %730 = vmatpush.msra.mxu0 %v406
        %731 = vmatpush.msra.mxu0 %v405
        %732 = vmatpush.msra.mxu0 %v404
        %733 = vmatpush.msra.mxu0 %v403
        %734 = vmatpush.msra.mxu0 %v402
        %735 = vmatpush.msra.mxu0 %v401
        %736 = vmatpush.msra.mxu0 %v400
        %737 = vmatpush.msra.mxu0 %v399
        %738 = vmatpush.msra.mxu0 %v398
        %739 = vmatpush.msra.mxu0 %v397
        %740 = vmatpush.msra.mxu0 %v396
        %741 = vmatpush.msra.mxu0 %v395
        %742 = vmatmul.f32.gmra.mxu0 %v533
        %v743 = vpop.f32.mrf.mxu0
        %v744 = vadd.f32 %v724, %v743
        %745 = vdwg.mxu0
        %746 = vmatpush.msra.mxu0 %v426
        %747 = vmatpush.msra.mxu0 %v425
        %748 = vmatpush.msra.mxu0 %v424
        %749 = vmatpush.msra.mxu0 %v423
        %750 = vmatpush.msra.mxu0 %v422
        %751 = vmatpush.msra.mxu0 %v421
        %752 = vmatpush.msra.mxu0 %v420
        %753 = vmatpush.msra.mxu0 %v419
        %754 = vmatpush.msra.mxu0 %v418
        %755 = vmatpush.msra.mxu0 %v417
        %756 = vmatpush.msra.mxu0 %v416
        %757 = vmatpush.msra.mxu0 %v415
        %758 = vmatpush.msra.mxu0 %v414
        %759 = vmatpush.msra.mxu0 %v413
        %760 = vmatpush.msra.mxu0 %v412
        %761 = vmatpush.msra.mxu0 %v411
        %762 = vmatmul.f32.gmra.mxu0 %v618
        %v763 = vpop.f32.mrf.mxu0
        %v764 = vadd.f32 %v744, %v763
        %765 = vdwg.mxu0
        %766 = vmatpush.msra.mxu0 %v442
        %767 = vmatpush.msra.mxu0 %v441
        %768 = vmatpush.msra.mxu0 %v440
        %769 = vmatpush.msra.mxu0 %v439
        %770 = vmatpush.msra.mxu0 %v438
        %771 = vmatpush.msra.mxu0 %v437
        %772 = vmatpush.msra.mxu0 %v436
        %773 = vmatpush.msra.mxu0 %v435
        %774 = vmatpush.msra.mxu0 %v434
        %775 = vmatpush.msra.mxu0 %v433
        %776 = vmatpush.msra.mxu0 %v432
        %777 = vmatpush.msra.mxu0 %v431
        %778 = vmatpush.msra.mxu0 %v430
        %779 = vmatpush.msra.mxu0 %v429
        %780 = vmatpush.msra.mxu0 %v428
        %781 = vmatpush.msra.mxu0 %v427
        %782 = vmatmul.f32.gmra.mxu0 %v703
        %v783 = vpop.f32.mrf.mxu0
        %v784 = vadd.f32 %v764, %v783
        %785 = vdwg.mxu0
        %v786 = vmax.f32 %v701, %v784
        %s787 = scalar_lea.vmem %s322, 56 [#allocation2]
        %v788 = vld [vmem:[%s787] sm:$0xff]
        %v789 = vld [vmem:[#allocation11 + $0x4] sm:$0x1]
        %v790 = vperm.slane %v789, 0
        %791 = vmatpush.msra.mxu0 %v394
        %792 = vmatpush.msra.mxu0 %v393
        %793 = vmatpush.msra.mxu0 %v392
        %794 = vmatpush.msra.mxu0 %v391
        %795 = vmatpush.msra.mxu0 %v390
        %796 = vmatpush.msra.mxu0 %v389
        %797 = vmatpush.msra.mxu0 %v388
        %798 = vmatpush.msra.mxu0 %v387
        %799 = vmatpush.msra.mxu0 %v386
        %800 = vmatpush.msra.mxu0 %v385
        %801 = vmatpush.msra.mxu0 %v384
        %802 = vmatpush.msra.mxu0 %v383
        %803 = vmatpush.msra.mxu0 %v382
        %804 = vmatpush.msra.mxu0 %v381
        %805 = vmatpush.msra.mxu0 %v380
        %806 = vmatpush.msra.mxu0 %v379
        %807 = vmatmul.f32.gmra.mxu0 %v533
        %v808 = vpop.f32.mrf.mxu0
        %v809 = vadd.f32 %v790, %v808
        %810 = vdwg.mxu0
        %811 = vmatpush.msra.mxu0 %v410
        %812 = vmatpush.msra.mxu0 %v409
        %813 = vmatpush.msra.mxu0 %v408
        %814 = vmatpush.msra.mxu0 %v407
        %815 = vmatpush.msra.mxu0 %v406
        %816 = vmatpush.msra.mxu0 %v405
        %817 = vmatpush.msra.mxu0 %v404
        %818 = vmatpush.msra.mxu0 %v403
        %819 = vmatpush.msra.mxu0 %v402
        %820 = vmatpush.msra.mxu0 %v401
        %821 = vmatpush.msra.mxu0 %v400
        %822 = vmatpush.msra.mxu0 %v399
        %823 = vmatpush.msra.mxu0 %v398
        %824 = vmatpush.msra.mxu0 %v397
        %825 = vmatpush.msra.mxu0 %v396
        %826 = vmatpush.msra.mxu0 %v395
        %827 = vmatmul.f32.gmra.mxu0 %v618
        %v828 = vpop.f32.mrf.mxu0
        %v829 = vadd.f32 %v809, %v828
        %830 = vdwg.mxu0
        %831 = vmatpush.msra.mxu0 %v426
        %832 = vmatpush.msra.mxu0 %v425
        %833 = vmatpush.msra.mxu0 %v424
        %834 = vmatpush.msra.mxu0 %v423
        %835 = vmatpush.msra.mxu0 %v422
        %836 = vmatpush.msra.mxu0 %v421
        %837 = vmatpush.msra.mxu0 %v420
        %838 = vmatpush.msra.mxu0 %v419
        %839 = vmatpush.msra.mxu0 %v418
        %840 = vmatpush.msra.mxu0 %v417
        %841 = vmatpush.msra.mxu0 %v416
        %842 = vmatpush.msra.mxu0 %v415
        %843 = vmatpush.msra.mxu0 %v414
        %844 = vmatpush.msra.mxu0 %v413
        %845 = vmatpush.msra.mxu0 %v412
        %846 = vmatpush.msra.mxu0 %v411
        %847 = vmatmul.f32.gmra.mxu0 %v703
        %v848 = vpop.f32.mrf.mxu0
        %v849 = vadd.f32 %v829, %v848
        %850 = vdwg.mxu0
        %851 = vmatpush.msra.mxu0 %v442
        %852 = vmatpush.msra.mxu0 %v441
        %853 = vmatpush.msra.mxu0 %v440
        %854 = vmatpush.msra.mxu0 %v439
        %855 = vmatpush.msra.mxu0 %v438
        %856 = vmatpush.msra.mxu0 %v437
        %857 = vmatpush.msra.mxu0 %v436
        %858 = vmatpush.msra.mxu0 %v435
        %859 = vmatpush.msra.mxu0 %v434
        %860 = vmatpush.msra.mxu0 %v433
        %861 = vmatpush.msra.mxu0 %v432
        %862 = vmatpush.msra.mxu0 %v431
        %863 = vmatpush.msra.mxu0 %v430
        %864 = vmatpush.msra.mxu0 %v429
        %865 = vmatpush.msra.mxu0 %v428
        %866 = vmatpush.msra.mxu0 %v427
        %867 = vmatmul.f32.gmra.mxu0 %v788
        %v868 = vpop.f32.mrf.mxu0
        %v869 = vadd.f32 %v849, %v868
        %870 = vdwg.mxu0
        %v871 = vmax.f32 %v786, %v869
        %s872 = scalar_lea.vmem %s322, 64 [#allocation2]
        %v873 = vld [vmem:[%s872] sm:$0xff]
        %v874 = vld [vmem:[#allocation11 + $0x5] sm:$0x1]
        %v875 = vperm.slane %v874, 0
        %876 = vmatpush.msra.mxu0 %v394
        %877 = vmatpush.msra.mxu0 %v393
        %878 = vmatpush.msra.mxu0 %v392
        %879 = vmatpush.msra.mxu0 %v391
        %880 = vmatpush.msra.mxu0 %v390
        %881 = vmatpush.msra.mxu0 %v389
        %882 = vmatpush.msra.mxu0 %v388
        %883 = vmatpush.msra.mxu0 %v387
        %884 = vmatpush.msra.mxu0 %v386
        %885 = vmatpush.msra.mxu0 %v385
        %886 = vmatpush.msra.mxu0 %v384
        %887 = vmatpush.msra.mxu0 %v383
        %888 = vmatpush.msra.mxu0 %v382
        %889 = vmatpush.msra.mxu0 %v381
        %890 = vmatpush.msra.mxu0 %v380
        %891 = vmatpush.msra.mxu0 %v379
        %892 = vmatmul.f32.gmra.mxu0 %v618
        %v893 = vpop.f32.mrf.mxu0
        %v894 = vadd.f32 %v875, %v893
        %895 = vdwg.mxu0
        %896 = vmatpush.msra.mxu0 %v410
        %897 = vmatpush.msra.mxu0 %v409
        %898 = vmatpush.msra.mxu0 %v408
        %899 = vmatpush.msra.mxu0 %v407
        %900 = vmatpush.msra.mxu0 %v406
        %901 = vmatpush.msra.mxu0 %v405
        %902 = vmatpush.msra.mxu0 %v404
        %903 = vmatpush.msra.mxu0 %v403
        %904 = vmatpush.msra.mxu0 %v402
        %905 = vmatpush.msra.mxu0 %v401
        %906 = vmatpush.msra.mxu0 %v400
        %907 = vmatpush.msra.mxu0 %v399
        %908 = vmatpush.msra.mxu0 %v398
        %909 = vmatpush.msra.mxu0 %v397
        %910 = vmatpush.msra.mxu0 %v396
        %911 = vmatpush.msra.mxu0 %v395
        %912 = vmatmul.f32.gmra.mxu0 %v703
        %v913 = vpop.f32.mrf.mxu0
        %v914 = vadd.f32 %v894, %v913
        %915 = vdwg.mxu0
        %916 = vmatpush.msra.mxu0 %v426
        %917 = vmatpush.msra.mxu0 %v425
        %918 = vmatpush.msra.mxu0 %v424
        %919 = vmatpush.msra.mxu0 %v423
        %920 = vmatpush.msra.mxu0 %v422
        %921 = vmatpush.msra.mxu0 %v421
        %922 = vmatpush.msra.mxu0 %v420
        %923 = vmatpush.msra.mxu0 %v419
        %924 = vmatpush.msra.mxu0 %v418
        %925 = vmatpush.msra.mxu0 %v417
        %926 = vmatpush.msra.mxu0 %v416
        %927 = vmatpush.msra.mxu0 %v415
        %928 = vmatpush.msra.mxu0 %v414
        %929 = vmatpush.msra.mxu0 %v413
        %930 = vmatpush.msra.mxu0 %v412
        %931 = vmatpush.msra.mxu0 %v411
        %932 = vmatmul.f32.gmra.mxu0 %v788
        %v933 = vpop.f32.mrf.mxu0
        %v934 = vadd.f32 %v914, %v933
        %935 = vdwg.mxu0
        %936 = vmatpush.msra.mxu0 %v442
        %937 = vmatpush.msra.mxu0 %v441
        %938 = vmatpush.msra.mxu0 %v440
        %939 = vmatpush.msra.mxu0 %v439
        %940 = vmatpush.msra.mxu0 %v438
        %941 = vmatpush.msra.mxu0 %v437
        %942 = vmatpush.msra.mxu0 %v436
        %943 = vmatpush.msra.mxu0 %v435
        %944 = vmatpush.msra.mxu0 %v434
        %945 = vmatpush.msra.mxu0 %v433
        %946 = vmatpush.msra.mxu0 %v432
        %947 = vmatpush.msra.mxu0 %v431
        %948 = vmatpush.msra.mxu0 %v430
        %949 = vmatpush.msra.mxu0 %v429
        %950 = vmatpush.msra.mxu0 %v428
        %951 = vmatpush.msra.mxu0 %v427
        %952 = vmatmul.f32.gmra.mxu0 %v873
        %v953 = vpop.f32.mrf.mxu0
        %v954 = vadd.f32 %v934, %v953
        %955 = vdwg.mxu0
        %v956 = vmax.f32 %v871, %v954
        %s957 = scalar_lea.vmem %s322, 72 [#allocation2]
        %v958 = vld [vmem:[%s957] sm:$0xff]
        %v959 = vld [vmem:[#allocation11 + $0x6] sm:$0x1]
        %v960 = vperm.slane %v959, 0
        %961 = vmatpush.msra.mxu0 %v394
        %962 = vmatpush.msra.mxu0 %v393
        %963 = vmatpush.msra.mxu0 %v392
        %964 = vmatpush.msra.mxu0 %v391
        %965 = vmatpush.msra.mxu0 %v390
        %966 = vmatpush.msra.mxu0 %v389
        %967 = vmatpush.msra.mxu0 %v388
        %968 = vmatpush.msra.mxu0 %v387
        %969 = vmatpush.msra.mxu0 %v386
        %970 = vmatpush.msra.mxu0 %v385
        %971 = vmatpush.msra.mxu0 %v384
        %972 = vmatpush.msra.mxu0 %v383
        %973 = vmatpush.msra.mxu0 %v382
        %974 = vmatpush.msra.mxu0 %v381
        %975 = vmatpush.msra.mxu0 %v380
        %976 = vmatpush.msra.mxu0 %v379
        %977 = vmatmul.f32.gmra.mxu0 %v703
        %v978 = vpop.f32.mrf.mxu0
        %v979 = vadd.f32 %v960, %v978
        %980 = vdwg.mxu0
        %981 = vmatpush.msra.mxu0 %v410
        %982 = vmatpush.msra.mxu0 %v409
        %983 = vmatpush.msra.mxu0 %v408
        %984 = vmatpush.msra.mxu0 %v407
        %985 = vmatpush.msra.mxu0 %v406
        %986 = vmatpush.msra.mxu0 %v405
        %987 = vmatpush.msra.mxu0 %v404
        %988 = vmatpush.msra.mxu0 %v403
        %989 = vmatpush.msra.mxu0 %v402
        %990 = vmatpush.msra.mxu0 %v401
        %991 = vmatpush.msra.mxu0 %v400
        %992 = vmatpush.msra.mxu0 %v399
        %993 = vmatpush.msra.mxu0 %v398
        %994 = vmatpush.msra.mxu0 %v397
        %995 = vmatpush.msra.mxu0 %v396
        %996 = vmatpush.msra.mxu0 %v395
        %997 = vmatmul.f32.gmra.mxu0 %v788
        %v998 = vpop.f32.mrf.mxu0
        %v999 = vadd.f32 %v979, %v998
        %1000 = vdwg.mxu0
        %1001 = vmatpush.msra.mxu0 %v426
        %1002 = vmatpush.msra.mxu0 %v425
        %1003 = vmatpush.msra.mxu0 %v424
        %1004 = vmatpush.msra.mxu0 %v423
        %1005 = vmatpush.msra.mxu0 %v422
        %1006 = vmatpush.msra.mxu0 %v421
        %1007 = vmatpush.msra.mxu0 %v420
        %1008 = vmatpush.msra.mxu0 %v419
        %1009 = vmatpush.msra.mxu0 %v418
        %1010 = vmatpush.msra.mxu0 %v417
        %1011 = vmatpush.msra.mxu0 %v416
        %1012 = vmatpush.msra.mxu0 %v415
        %1013 = vmatpush.msra.mxu0 %v414
        %1014 = vmatpush.msra.mxu0 %v413
        %1015 = vmatpush.msra.mxu0 %v412
        %1016 = vmatpush.msra.mxu0 %v411
        %1017 = vmatmul.f32.gmra.mxu0 %v873
        %v1018 = vpop.f32.mrf.mxu0
        %v1019 = vadd.f32 %v999, %v1018
        %1020 = vdwg.mxu0
        %1021 = vmatpush.msra.mxu0 %v442
        %1022 = vmatpush.msra.mxu0 %v441
        %1023 = vmatpush.msra.mxu0 %v440
        %1024 = vmatpush.msra.mxu0 %v439
        %1025 = vmatpush.msra.mxu0 %v438
        %1026 = vmatpush.msra.mxu0 %v437
        %1027 = vmatpush.msra.mxu0 %v436
        %1028 = vmatpush.msra.mxu0 %v435
        %1029 = vmatpush.msra.mxu0 %v434
        %1030 = vmatpush.msra.mxu0 %v433
        %1031 = vmatpush.msra.mxu0 %v432
        %1032 = vmatpush.msra.mxu0 %v431
        %1033 = vmatpush.msra.mxu0 %v430
        %1034 = vmatpush.msra.mxu0 %v429
        %1035 = vmatpush.msra.mxu0 %v428
        %1036 = vmatpush.msra.mxu0 %v427
        %1037 = vmatmul.f32.gmra.mxu0 %v958
        %v1038 = vpop.f32.mrf.mxu0
        %v1039 = vadd.f32 %v1019, %v1038
        %1040 = vdwg.mxu0
        %v1041 = vmax.f32 %v956, %v1039
        %v1042 = vld [vmem:[#allocation10] sm:$0x1]
        %v1043 = vperm.slane %v1042, 0
        %v1044 = vadd.f32 %v1041, %v1043
        %v1045 = vmax.f32 %v1044, 0.0
        %v1046 = vld [vmem:[#allocation7] sm:$0xff]
        %v1047 = vld [vmem:[#allocation7 + $0x8] sm:$0xff]
        %v1048 = vld [vmem:[#allocation7 + $0x10] sm:$0xff]
        %v1049 = vld [vmem:[#allocation7 + $0x18] sm:$0xff]
        %v1050 = vld [vmem:[#allocation7 + $0x20] sm:$0xff]
        %v1051 = vld [vmem:[#allocation7 + $0x28] sm:$0xff]
        %v1052 = vld [vmem:[#allocation7 + $0x30] sm:$0xff]
        %v1053 = vld [vmem:[#allocation7 + $0x38] sm:$0xff]
        %v1054 = vld [vmem:[#allocation7 + $0x40] sm:$0xff]
        %v1055 = vld [vmem:[#allocation7 + $0x48] sm:$0xff]
        %v1056 = vld [vmem:[#allocation7 + $0x50] sm:$0xff]
        %v1057 = vld [vmem:[#allocation7 + $0x58] sm:$0xff]
        %v1058 = vld [vmem:[#allocation7 + $0x60] sm:$0xff]
        %v1059 = vld [vmem:[#allocation7 + $0x68] sm:$0xff]
        %v1060 = vld [vmem:[#allocation7 + $0x70] sm:$0xff]
        %v1061 = vld [vmem:[#allocation7 + $0x78] sm:$0xff]
        %v1062 = vld [vmem:[#allocation10 + $0x1] sm:$0x1]
        %v1063 = vperm.slane %v1062, 0
        %1064 = vmatpush.msra.mxu0 %v1061
        %1065 = vmatpush.msra.mxu0 %v1060
        %1066 = vmatpush.msra.mxu0 %v1059
        %1067 = vmatpush.msra.mxu0 %v1058
        %1068 = vmatpush.msra.mxu0 %v1057
        %1069 = vmatpush.msra.mxu0 %v1056
        %1070 = vmatpush.msra.mxu0 %v1055
        %1071 = vmatpush.msra.mxu0 %v1054
        %1072 = vmatpush.msra.mxu0 %v1053
        %1073 = vmatpush.msra.mxu0 %v1052
        %1074 = vmatpush.msra.mxu0 %v1051
        %1075 = vmatpush.msra.mxu0 %v1050
        %1076 = vmatpush.msra.mxu0 %v1049
        %1077 = vmatpush.msra.mxu0 %v1048
        %1078 = vmatpush.msra.mxu0 %v1047
        %1079 = vmatpush.msra.mxu0 %v1046
        %1080 = vmatmul.f32.gmra.mxu0 %v1045
        %v1081 = vpop.f32.mrf.mxu0
        %v1082 = vadd.f32 %v1063, %v1081
        %1083 = vdwg.mxu0
        %v1084 = vmax.f32 %v1082, 0.0
        %s1085 = scalar_lea.vmem [#allocation7], 128
        %v1086 = vld [vmem:[%s1085] sm:$0xff]
        %v1087 = vld [vmem:[%s1085 + $0x8] sm:$0xff]
        %v1088 = vld [vmem:[%s1085 + $0x10] sm:$0xff]
        %v1089 = vld [vmem:[%s1085 + $0x18] sm:$0xff]
        %v1090 = vld [vmem:[%s1085 + $0x20] sm:$0xff]
        %v1091 = vld [vmem:[%s1085 + $0x28] sm:$0xff]
        %v1092 = vld [vmem:[%s1085 + $0x30] sm:$0xff]
        %v1093 = vld [vmem:[%s1085 + $0x38] sm:$0xff]
        %v1094 = vld [vmem:[%s1085 + $0x40] sm:$0xff]
        %v1095 = vld [vmem:[%s1085 + $0x48] sm:$0xff]
        %v1096 = vld [vmem:[%s1085 + $0x50] sm:$0xff]
        %v1097 = vld [vmem:[%s1085 + $0x58] sm:$0xff]
        %v1098 = vld [vmem:[%s1085 + $0x60] sm:$0xff]
        %v1099 = vld [vmem:[%s1085 + $0x68] sm:$0xff]
        %v1100 = vld [vmem:[%s1085 + $0x70] sm:$0xff]
        %v1101 = vld [vmem:[%s1085 + $0x78] sm:$0xff]
        %v1102 = vld [vmem:[#allocation10 + $0x2] sm:$0x1]
        %v1103 = vperm.slane %v1102, 0
        %1104 = vmatpush.msra.mxu0 %v1101
        %1105 = vmatpush.msra.mxu0 %v1100
        %1106 = vmatpush.msra.mxu0 %v1099
        %1107 = vmatpush.msra.mxu0 %v1098
        %1108 = vmatpush.msra.mxu0 %v1097
        %1109 = vmatpush.msra.mxu0 %v1096
        %1110 = vmatpush.msra.mxu0 %v1095
        %1111 = vmatpush.msra.mxu0 %v1094
        %1112 = vmatpush.msra.mxu0 %v1093
        %1113 = vmatpush.msra.mxu0 %v1092
        %1114 = vmatpush.msra.mxu0 %v1091
        %1115 = vmatpush.msra.mxu0 %v1090
        %1116 = vmatpush.msra.mxu0 %v1089
        %1117 = vmatpush.msra.mxu0 %v1088
        %1118 = vmatpush.msra.mxu0 %v1087
        %1119 = vmatpush.msra.mxu0 %v1086
        %1120 = vmatmul.f32.gmra.mxu0 %v1084
        %v1121 = vpop.f32.mrf.mxu0
        %v1122 = vadd.f32 %v1103, %v1121
        %1123 = vdwg.mxu0
        %v1124 = vmax.f32 %v1122, 0.0
        %v1125 = vld [vmem:[#allocation8] sm:$0xff]
        %v1126 = vld [vmem:[#allocation8 + $0x8] sm:$0xff]
        %v1127 = vld [vmem:[#allocation8 + $0x10] sm:$0xff]
        %v1128 = vld [vmem:[#allocation8 + $0x18] sm:$0xff]
        %v1129 = vld [vmem:[#allocation8 + $0x20] sm:$0xff]
        %v1130 = vld [vmem:[#allocation8 + $0x28] sm:$0xff]
        %v1131 = vld [vmem:[#allocation8 + $0x30] sm:$0xff]
        %v1132 = vld [vmem:[#allocation8 + $0x38] sm:$0xff]
        %v1133 = vld [vmem:[#allocation8 + $0x40] sm:$0xff]
        %v1134 = vld [vmem:[#allocation8 + $0x48] sm:$0xff]
        %v1135 = vld [vmem:[#allocation8 + $0x50] sm:$0xff]
        %v1136 = vld [vmem:[#allocation8 + $0x58] sm:$0xff]
        %v1137 = vld [vmem:[#allocation8 + $0x60] sm:$0xff]
        %v1138 = vld [vmem:[#allocation8 + $0x68] sm:$0xff]
        %v1139 = vld [vmem:[#allocation8 + $0x70] sm:$0xff]
        %v1140 = vld [vmem:[#allocation8 + $0x78] sm:$0xff]
        %v1141 = vld [vmem:[%s5] sm:$0x1]
        %v1143 = vperm.slane %v1141, 0
        %1145 = vmatpush.msra.mxu0 %v1140
        %1146 = vmatpush.msra.mxu0 %v1139
        %1147 = vmatpush.msra.mxu0 %v1138
        %1148 = vmatpush.msra.mxu0 %v1137
        %1149 = vmatpush.msra.mxu0 %v1136
        %1150 = vmatpush.msra.mxu0 %v1135
        %1151 = vmatpush.msra.mxu0 %v1134
        %1152 = vmatpush.msra.mxu0 %v1133
        %1153 = vmatpush.msra.mxu0 %v1132
        %1154 = vmatpush.msra.mxu0 %v1131
        %1155 = vmatpush.msra.mxu0 %v1130
        %1156 = vmatpush.msra.mxu0 %v1129
        %1157 = vmatpush.msra.mxu0 %v1128
        %1158 = vmatpush.msra.mxu0 %v1127
        %1159 = vmatpush.msra.mxu0 %v1126
        %1160 = vmatpush.msra.mxu0 %v1125
        %1161 = vmatmul.f32.gmra.mxu0 %v1124
        %v1162 = vpop.f32.mrf.mxu0
        %v1163 = vadd.f32 %v1143, %v1162
        %1164 = vdwg.mxu0
        %1165 = vst [vmem:[%s378] sm:$0xff] %v1163
        %s1166 = sand.u32 %s187, 1
        %s1167 = scalar_lea.sflag [#allocation4], %s1166
        %s1168 = sand.u32 %s187, 1
        %s1169 = smul.addr %s1168, 8
        %s1170 = scalar_lea.vmem [#allocation13], %s1169
        // Predicated region
        $region73: #{tpu_custom_call.1} parent=47 // pred_check
          %p1171 = pneg %p197
        $region74: #{tpu_custom_call.1} parent=47 // pred_check_branch
          %1173 = sbr.rel (%p1171) target = $region76
        $region75: #{tpu_custom_call.1} parent=47 // pred_region
          %1175 = vsyncadd %s1167, 0
          %s1176 = smul.addr %s27, 8
          %s1177 = scalar_lea.hbm %s7, %s1176
          %s1179 = sshll.u32 %s1170, 4
          %s1180 = int_to_ptr.vmem [resolvable:$true] %s1179
          %s1181 = sshll.u32 %s1177, 4
          %s1182 = int_to_ptr.hbm [resolvable:$true] %s1181
          %1184 = dma.vmem_to_hbm [thread:$0]  %s1180, 128, %s1182, %s1167
        $region76: #{tpu_custom_call.1} parent=47 // pred_fallthru
          _
      $region48: #{tpu_custom_call.1} parent=5 // pred_fallthru
        _
      %p1185 = scmp.le.s32.totalorder 2, %s22
      // Predicated region
      $region77: #{tpu_custom_call.1} parent=5 // pred_check
        %p1186 = pneg %p1185
      $region78: #{tpu_custom_call.1} parent=5 // pred_check_branch
        %1188 = sbr.rel (%p1186) target = $region80
      $region79: #{tpu_custom_call.1} parent=5 // pred_region
        %s1189 = ssub.s32 %s22, 2
        // Predicated region
        $region81: #{tpu_custom_call.1} parent=79 // pred_check
          %p1190 = pneg %p203
        $region82: #{tpu_custom_call.1} parent=79 // pred_check_branch
          %1192 = sbr.rel (%p1190) target = $region84
        $region83: #{tpu_custom_call.1} parent=79 // pred_region
          %s1193 = sand.u32 %s188, 1
          %s1194 = scalar_lea.sflag [#allocation4], %s1193
          %s1195 = sand.u32 %s188, 1
          %s1196 = smul.addr %s1195, 8
          %s1197 = scalar_lea.vmem [#allocation13], %s1196
          %1199 = dma.done %s1194, 128
        $region84: #{tpu_custom_call.1} parent=79 // pred_fallthru
          _
      $region80: #{tpu_custom_call.1} parent=5 // pred_fallthru
        _
    $region6: #{tpu_custom_call.1} parent=1 // loop_footer
      %s26 = sadd.s32 1, %s22
    $region7: #{tpu_custom_call.1} parent=1 // loop_footer_branch
      %21 = sbr.rel target = $region3
    $region8: #{tpu_custom_call.1} parent=1 // loop_exit
      _
    %1200 = vsyncpa [#allocation3], 1
    %s1201 = scalar_lea.sflag [#allocation3], 1
    %1202 = vsyncpa %s1201, 1
    %1203 = vsyncpa [#allocation6], 1
    %1204 = vsyncpa [#allocation9], 1
    %1205 = vsyncpa [#allocation12], 1
    %1206 = vsyncpa [#allocation4], 1
    %s1207 = scalar_lea.sflag [#allocation4], 1
    %1208 = vsyncpa %s1207, 1

</llo_original>
